<compile_context>
chip_gen: v6e
topology: v6e:2x2x1
jax: 0.10.0
libtpu: 0.0.40
codegen_flags: <defaults>
</compile_context>

<pallas_src>
import functools
import numpy as np
import jax
import jax.numpy as jnp
from jax import lax
from jax.experimental import pallas as pl
from jax.experimental.pallas import tpu as pltpu

_NEG_BIG = -1e30                      # finite large-negative mask value (NaN-safe)
_NT = (((1,), (1,)), ((), ()))        # contract dim-1 of both operands: Q @ K^T, no transpose op


def _mha_kernel(q_ref, k_ref, v_ref, bias_ref,
                wq_ref, bq_ref, wk_ref, bk_ref, wv_ref, bv_ref,
                wfc_ref, bfc_ref, gamma_ref, beta_ref,
                *outs_and_scratch,
                n_head, inv_temp, eps, return_attn):
    if return_attn:
        out_ref, attn_ref, acc_ref = outs_and_scratch
    else:
        out_ref, acc_ref = outs_and_scratch
        attn_ref = None

    h = pl.program_id(2)                                # head index (innermost grid axis)

    q_f32 = q_ref[0]                                    # (tq, d_model) f32 (residual / LN input)
    q_bf = q_f32.astype(jnp.bfloat16)
    k_bf = k_ref[0]                                     # (Lk, d_model) bf16 (pre-cast in wrapper)
    v_bf = v_ref[0]                                     # (Lv, d_model) bf16
    bias = bias_ref[0].astype(jnp.float32)              # (tq, Lk) additive mask bias (0 / -1e30)

    # --- per-head projections; weights (d_model, d_k|d_v) bf16, biases f32 ---
    qh = (jnp.dot(q_bf, wq_ref[0], preferred_element_type=jnp.float32)
          + bq_ref[0]) * inv_temp                       # (tq, d_k), softmax scale applied in f32
    kh = jnp.dot(k_bf, wk_ref[0], preferred_element_type=jnp.float32) + bk_ref[0]
    vh = jnp.dot(v_bf, wv_ref[0], preferred_element_type=jnp.float32) + bv_ref[0]

    # --- scaled dot-product attention (exact softmax over the full kv extent) ---
    scores = lax.dot_general(qh.astype(jnp.bfloat16), kh.astype(jnp.bfloat16),
                             _NT, preferred_element_type=jnp.float32) + bias
    m = jnp.max(scores, axis=-1, keepdims=True)
    e = jnp.exp(scores - m)
    attn = e * pl.reciprocal(jnp.sum(e, axis=-1, keepdims=True), approx=True)
    if return_attn:
        attn_ref[0, 0] = attn.astype(attn_ref.dtype)    # bf16 writeback (optional)

    ctx = jnp.dot(attn.astype(jnp.bfloat16), vh.astype(jnp.bfloat16),
                  preferred_element_type=jnp.float32)   # (tq, d_v)

    # --- output projection accumulated across the head grid axis ---
    @pl.when(h == 0)
    def _():
        acc_ref[...] = jnp.zeros_like(acc_ref)

    acc_ref[...] += jnp.dot(ctx.astype(jnp.bfloat16), wfc_ref[0],
                            preferred_element_type=jnp.float32)   # (tq, d_model)

    # --- final head: fc bias + residual + single-pass LayerNorm ---
    @pl.when(h == n_head - 1)
    def _():
        x = acc_ref[...] + bfc_ref[...] + q_f32
        mu = jnp.mean(x, axis=-1, keepdims=True)
        ms = jnp.mean(x * x, axis=-1, keepdims=True)
        var = ms - mu * mu
        y = (x - mu) * lax.rsqrt(var + eps)
        out_ref[0] = y * gamma_ref[...] + beta_ref[...]


def multi_head_attention(q, k, v, mask, params, *, n_head, d_k, d_v,
                         eps=1e-5, return_attn=True, q_tile=256):
    sz_b, len_q, d_model = q.shape
    _, len_k, _ = k.shape
    _, len_v, _ = v.shape
    wq, bq, wk, bk, wv, bv, wfc, bfc, gamma, beta = params

    inv_temp = float(1.0 / np.power(d_k, 0.5))

    # Per-head weight slabs (H, d_model, d_k|d_v), bf16; leading-axis head indexing in-kernel.
    wq_h = jnp.transpose(wq.reshape(n_head, d_k, d_model), (0, 2, 1)).astype(jnp.bfloat16)
    wk_h = jnp.transpose(wk.reshape(n_head, d_k, d_model), (0, 2, 1)).astype(jnp.bfloat16)
    wv_h = jnp.transpose(wv.reshape(n_head, d_v, d_model), (0, 2, 1)).astype(jnp.bfloat16)
    wfc_h = wfc.T.reshape(n_head, d_v, d_model).astype(jnp.bfloat16)
    bq_h = bq.reshape(n_head, 1, d_k).astype(jnp.float32)
    bk_h = bk.reshape(n_head, 1, d_k).astype(jnp.float32)
    bv_h = bv.reshape(n_head, 1, d_v).astype(jnp.float32)
    bfc2 = bfc.reshape(1, d_model).astype(jnp.float32)
    gamma2 = gamma.reshape(1, d_model).astype(jnp.float32)
    beta2 = beta.reshape(1, d_model).astype(jnp.float32)

    # k/v pre-cast to bf16 in HBM (halves their DMA); q stays f32 (residual + LayerNorm need it).
    k_bf = k.astype(jnp.bfloat16)
    v_bf = v.astype(jnp.bfloat16)

    # mask -> additive bias, precomputed once, bf16 (halves mask DMA traffic)
    bias = jnp.where(mask > 0, jnp.float32(_NEG_BIG), jnp.float32(0.0)).astype(jnp.bfloat16)

    tq = len_q if len_q <= q_tile else q_tile
    n_q = pl.cdiv(len_q, tq)

    kernel = functools.partial(_mha_kernel, n_head=n_head, inv_temp=inv_temp,
                               eps=eps, return_attn=return_attn)

    in_specs = [
        pl.BlockSpec((1, tq, d_model), lambda b, qi, h: (b, qi, 0)),     # q   (f32)
        pl.BlockSpec((1, len_k, d_model), lambda b, qi, h: (b, 0, 0)),   # k   (bf16)
        pl.BlockSpec((1, len_v, d_model), lambda b, qi, h: (b, 0, 0)),   # v   (bf16)
        pl.BlockSpec((1, tq, len_k), lambda b, qi, h: (b, qi, 0)),       # mask bias
        pl.BlockSpec((1, d_model, d_k), lambda b, qi, h: (h, 0, 0)),     # wq[h]
        pl.BlockSpec((1, 1, d_k), lambda b, qi, h: (h, 0, 0)),           # bq[h]
        pl.BlockSpec((1, d_model, d_k), lambda b, qi, h: (h, 0, 0)),     # wk[h]
        pl.BlockSpec((1, 1, d_k), lambda b, qi, h: (h, 0, 0)),           # bk[h]
        pl.BlockSpec((1, d_model, d_v), lambda b, qi, h: (h, 0, 0)),     # wv[h]
        pl.BlockSpec((1, 1, d_v), lambda b, qi, h: (h, 0, 0)),           # bv[h]
        pl.BlockSpec((1, d_v, d_model), lambda b, qi, h: (h, 0, 0)),     # wfc[h]
        pl.BlockSpec((1, d_model), lambda b, qi, h: (0, 0)),             # bfc
        pl.BlockSpec((1, d_model), lambda b, qi, h: (0, 0)),             # gamma
        pl.BlockSpec((1, d_model), lambda b, qi, h: (0, 0)),             # beta
    ]

    out_spec_y = pl.BlockSpec((1, tq, d_model), lambda b, qi, h: (b, qi, 0))
    if return_attn:
        out_shape = (jax.ShapeDtypeStruct((sz_b, len_q, d_model), jnp.float32),
                     jax.ShapeDtypeStruct((n_head, sz_b, len_q, len_k), jnp.bfloat16))
        out_specs = [out_spec_y,
                     pl.BlockSpec((1, 1, tq, len_k), lambda b, qi, h: (h, b, qi, 0))]
    else:
        out_shape = jax.ShapeDtypeStruct((sz_b, len_q, d_model), jnp.float32)
        out_specs = out_spec_y

    # VMEM budget: ~3/4 of physical capacity (v7x: 64 MiB -> 48; v5e/v6e: 128 MiB -> 96 cap).
    try:
        vmem_limit = min(int(pltpu.get_tpu_info().vmem_capacity_bytes * 3 // 4),
                         96 * 1024 * 1024)
    except Exception:
        vmem_limit = 48 * 1024 * 1024

    res = pl.pallas_call(
        kernel,
        out_shape=out_shape,
        grid_spec=pltpu.PrefetchScalarGridSpec(
            num_scalar_prefetch=0,
            grid=(sz_b, n_q, n_head),
            in_specs=in_specs,
            out_specs=out_specs,
            scratch_shapes=[pltpu.VMEM((tq, d_model), jnp.float32)],   # fc accumulator
        ),
        compiler_params=pltpu.CompilerParams(
            dimension_semantics=("parallel", "parallel", "arbitrary"),
            vmem_limit_bytes=vmem_limit,
        ),
    )(q, k_bf, v_bf, bias, wq_h, bq_h, wk_h, bk_h, wv_h, bv_h,
      wfc_h, bfc2, gamma2, beta2)

    if return_attn:
        out, attn = res
        # match PyTorch attn layout: (n_head * sz_b, len_q, len_k), head-major
        return out, attn.reshape(n_head * sz_b, len_q, len_k)
    return res


def _reference(q, k, v, mask, params, *, n_head, d_k, d_v, eps=1e-5):
    """Pure-JAX (f32) replica of the PyTorch forward for verification."""
    wq, bq, wk, bk, wv, bv, wfc, bfc, gamma, beta = params
    sz_b, len_q, d_model = q.shape
    len_k = k.shape[1]
    residual = q
    qp = (q @ wq.T + bq).reshape(sz_b, len_q, n_head, d_k)
    kp = (k @ wk.T + bk).reshape(sz_b, len_k, n_head, d_k)
    vp = (v @ wv.T + bv).reshape(sz_b, len_k, n_head, d_v)
    qp = jnp.transpose(qp, (2, 0, 1, 3)).reshape(-1, len_q, d_k)
    kp = jnp.transpose(kp, (2, 0, 1, 3)).reshape(-1, len_k, d_k)
    vp = jnp.transpose(vp, (2, 0, 1, 3)).reshape(-1, len_k, d_v)
    mask_rep = jnp.tile(mask, (n_head, 1, 1))
    scores = jnp.einsum("bqd,bkd->bqk", qp, kp) / np.power(d_k, 0.5)
    scores = jnp.where(mask_rep > 0, _NEG_BIG, scores)   # finite large-negative (NaN-safe)
    attn = jax.nn.softmax(scores, axis=-1)
    out = jnp.einsum("bqk,bkd->bqd", attn, vp)
    out = out.reshape(n_head, sz_b, len_q, d_v)
    out = jnp.transpose(out, (1, 2, 0, 3)).reshape(sz_b, len_q, -1)
    out = out @ wfc.T + bfc
    x = out + residual
    mu = jnp.mean(x, axis=-1, keepdims=True)
    var = jnp.mean((x - mu) ** 2, axis=-1, keepdims=True)
    y = (x - mu) / jnp.sqrt(var + eps) * gamma + beta
    return y, attn


if __name__ == "__main__":
    # small shapes consistent with the module
    n_head, d_model, d_k, d_v = 2, 64, 32, 32
    sz_b, seq_len = 2, 16

    key = jax.random.PRNGKey(0)
    ks = jax.random.split(key, 10)

    # deterministic parameter init mirroring the PyTorch __init__ stds
    std_qk = np.sqrt(2.0 / (d_model + d_k))
    std_v = np.sqrt(2.0 / (d_model + d_v))
    std_fc = np.sqrt(2.0 / (n_head * d_v + d_model))  # xavier_normal_
    wq = jax.random.normal(ks[0], (n_head * d_k, d_model), jnp.float32) * std_qk
    wk = jax.random.normal(ks[1], (n_head * d_k, d_model), jnp.float32) * std_qk
    wv = jax.random.normal(ks[2], (n_head * d_v, d_model), jnp.float32) * std_v
    wfc = jax.random.normal(ks[3], (d_model, n_head * d_v), jnp.float32) * std_fc
    bq = jax.random.uniform(ks[4], (n_head * d_k,), jnp.float32, -0.1, 0.1)
    bk = jax.random.uniform(ks[5], (n_head * d_k,), jnp.float32, -0.1, 0.1)
    bv = jax.random.uniform(ks[6], (n_head * d_v,), jnp.float32, -0.1, 0.1)
    bfc = jax.random.uniform(ks[7], (d_model,), jnp.float32, -0.1, 0.1)
    gamma = jnp.ones((d_model,), jnp.float32)
    beta = jnp.zeros((d_model,), jnp.float32)
    params = (wq, bq, wk, bk, wv, bv, wfc, bfc, gamma, beta)

    # inputs (self-attention style call)
    q = jax.random.normal(ks[8], (sz_b, seq_len, d_model), jnp.float32)
    k = q
    v = q
    # causal mask: 1 where future position (masked out), matching torch masked_fill(mask, -inf)
    causal = (jnp.arange(seq_len)[None, :] > jnp.arange(seq_len)[:, None]).astype(jnp.float32)
    mask = jnp.broadcast_to(causal, (sz_b, seq_len, seq_len))

    # path 1: full module semantics (output + attention probabilities)
    out, attn = multi_head_attention(q, k, v, mask, params,
                                     n_head=n_head, d_k=d_k, d_v=d_v, return_attn=True)
    jax.block_until_ready(out)
    jax.block_until_ready(attn)

    # path 2: probability output elided (no attn HBM writeback)
    out_noattn = multi_head_attention(q, k, v, mask, params,
                                      n_head=n_head, d_k=d_k, d_v=d_v, return_attn=False)
    jax.block_until_ready(out_noattn)

    ref_out, ref_attn = _reference(q, k, v, mask, params,
                                   n_head=n_head, d_k=d_k, d_v=d_v)
    # bf16 matmul operands + bf16 attn writeback + approx reciprocal -> looser tolerances
    np.testing.assert_allclose(np.asarray(out), np.asarray(ref_out), rtol=5e-2, atol=5e-2)
    np.testing.assert_allclose(np.asarray(out_noattn), np.asarray(ref_out), rtol=5e-2, atol=5e-2)
    np.testing.assert_allclose(np.asarray(attn.astype(jnp.float32)),
                               np.asarray(ref_attn), rtol=2e-2, atol=2e-2)

    print("KERNEL_OK")
</pallas_src>

<mosaic_0001>
module attributes {stable_mosaic.version = 11 : i64} {
  func.func @_mha_kernel(%arg0: i32, %arg1: i32, %arg2: i32, %arg3: memref<1x16x64xf32, #tpu.memory_space<vmem>>, %arg4: memref<1x16x64xbf16, #tpu.memory_space<vmem>>, %arg5: memref<1x16x64xbf16, #tpu.memory_space<vmem>>, %arg6: memref<1x16x16xbf16, #tpu.memory_space<vmem>>, %arg7: memref<1x64x32xbf16, #tpu.memory_space<vmem>>, %arg8: memref<1x1x32xf32, #tpu.memory_space<vmem>>, %arg9: memref<1x64x32xbf16, #tpu.memory_space<vmem>>, %arg10: memref<1x1x32xf32, #tpu.memory_space<vmem>>, %arg11: memref<1x64x32xbf16, #tpu.memory_space<vmem>>, %arg12: memref<1x1x32xf32, #tpu.memory_space<vmem>>, %arg13: memref<1x32x64xbf16, #tpu.memory_space<vmem>>, %arg14: memref<1x64xf32, #tpu.memory_space<vmem>>, %arg15: memref<1x64xf32, #tpu.memory_space<vmem>>, %arg16: memref<1x64xf32, #tpu.memory_space<vmem>>, %arg17: memref<1x16x64xf32, #tpu.memory_space<vmem>>, %arg18: memref<1x1x16x16xbf16, #tpu.memory_space<vmem>>, %arg19: memref<16x64xf32, #tpu.memory_space<vmem>>) attributes {dimension_semantics = [#tpu.dimension_semantics<parallel>, #tpu.dimension_semantics<parallel>, #tpu.dimension_semantics<arbitrary>], iteration_bounds = array<i64: 2, 1, 2>, scalar_prefetch = 0 : i64, scratch_operands = 1 : i64, tpu.core_type = #tpu.core_type<tc>, window_params = [{transform_indices = @transform_0, window_bounds = array<i64: 1, 16, 64>}, {transform_indices = @transform_1, window_bounds = array<i64: 1, 16, 64>}, {transform_indices = @transform_2, window_bounds = array<i64: 1, 16, 64>}, {transform_indices = @transform_3, window_bounds = array<i64: 1, 16, 16>}, {transform_indices = @transform_4, window_bounds = array<i64: 1, 64, 32>}, {transform_indices = @transform_5, window_bounds = array<i64: 1, 1, 32>}, {transform_indices = @transform_6, window_bounds = array<i64: 1, 64, 32>}, {transform_indices = @transform_7, window_bounds = array<i64: 1, 1, 32>}, {transform_indices = @transform_8, window_bounds = array<i64: 1, 64, 32>}, {transform_indices = @transform_9, window_bounds = array<i64: 1, 1, 32>}, {transform_indices = @transform_10, window_bounds = array<i64: 1, 32, 64>}, {pipeline_mode = #tpu.pipeline_mode<synchronous>, transform_indices = @transform_11, window_bounds = array<i64: 1, 64>}, {pipeline_mode = #tpu.pipeline_mode<synchronous>, transform_indices = @transform_12, window_bounds = array<i64: 1, 64>}, {pipeline_mode = #tpu.pipeline_mode<synchronous>, transform_indices = @transform_13, window_bounds = array<i64: 1, 64>}, {transform_indices = @transform_14, window_bounds = array<i64: 1, 16, 64>}, {transform_indices = @transform_15, window_bounds = array<i64: 1, 1, 16, 16>}]} {
    %c0 = arith.constant 0 : index
    %c0_0 = arith.constant 0 : index
    %c0_1 = arith.constant 0 : index
    %0 = vector.load %arg3[%c0, %c0_0, %c0_1] : memref<1x16x64xf32, #tpu.memory_space<vmem>>, vector<1x16x64xf32>
    %1 = vector.shape_cast %0 : vector<1x16x64xf32> to vector<16x64xf32>
    %2 = arith.truncf %1 : vector<16x64xf32> to vector<16x64xbf16>
    %c0_2 = arith.constant 0 : index
    %c0_3 = arith.constant 0 : index
    %c0_4 = arith.constant 0 : index
    %3 = vector.load %arg4[%c0_2, %c0_3, %c0_4] : memref<1x16x64xbf16, #tpu.memory_space<vmem>>, vector<1x16x64xbf16>
    %4 = vector.shape_cast %3 : vector<1x16x64xbf16> to vector<16x64xbf16>
    %c0_5 = arith.constant 0 : index
    %c0_6 = arith.constant 0 : index
    %c0_7 = arith.constant 0 : index
    %5 = vector.load %arg5[%c0_5, %c0_6, %c0_7] : memref<1x16x64xbf16, #tpu.memory_space<vmem>>, vector<1x16x64xbf16>
    %6 = vector.shape_cast %5 : vector<1x16x64xbf16> to vector<16x64xbf16>
    %c0_8 = arith.constant 0 : index
    %c0_9 = arith.constant 0 : index
    %c0_10 = arith.constant 0 : index
    %7 = vector.load %arg6[%c0_8, %c0_9, %c0_10] : memref<1x16x16xbf16, #tpu.memory_space<vmem>>, vector<1x16x16xbf16>
    %8 = vector.shape_cast %7 : vector<1x16x16xbf16> to vector<16x16xbf16>
    %9 = arith.extf %8 : vector<16x16xbf16> to vector<16x16xf32>
    %c0_11 = arith.constant 0 : index
    %c0_12 = arith.constant 0 : index
    %c0_13 = arith.constant 0 : index
    %10 = vector.load %arg7[%c0_11, %c0_12, %c0_13] : memref<1x64x32xbf16, #tpu.memory_space<vmem>>, vector<1x64x32xbf16>
    %11 = vector.shape_cast %10 : vector<1x64x32xbf16> to vector<64x32xbf16>
    %cst = arith.constant dense<0.000000e+00> : vector<16x32xf32>
    %12 = tpu.matmul %2, %11, %cst {dimension_numbers = #tpu.dot_dimension_numbers<[1], [0], [0], [1], [0, 0, 1, 1], [], []>} : vector<16x64xbf16>, vector<64x32xbf16>, vector<16x32xf32> -> vector<16x32xf32>
    %c0_14 = arith.constant 0 : index
    %c0_15 = arith.constant 0 : index
    %c0_16 = arith.constant 0 : index
    %13 = vector.load %arg8[%c0_14, %c0_15, %c0_16] : memref<1x1x32xf32, #tpu.memory_space<vmem>>, vector<1x1x32xf32>
    %14 = vector.shape_cast %13 : vector<1x1x32xf32> to vector<1x32xf32>
    %15 = vector.broadcast %14 : vector<1x32xf32> to vector<16x32xf32>
    %16 = arith.addf %12, %15 : vector<16x32xf32>
    %cst_17 = arith.constant 0.176776692 : f32
    %17 = vector.broadcast %cst_17 : f32 to vector<16x32xf32>
    %18 = arith.mulf %16, %17 : vector<16x32xf32>
    %c0_18 = arith.constant 0 : index
    %c0_19 = arith.constant 0 : index
    %c0_20 = arith.constant 0 : index
    %19 = vector.load %arg9[%c0_18, %c0_19, %c0_20] : memref<1x64x32xbf16, #tpu.memory_space<vmem>>, vector<1x64x32xbf16>
    %20 = vector.shape_cast %19 : vector<1x64x32xbf16> to vector<64x32xbf16>
    %cst_21 = arith.constant dense<0.000000e+00> : vector<16x32xf32>
    %21 = tpu.matmul %4, %20, %cst_21 {dimension_numbers = #tpu.dot_dimension_numbers<[1], [0], [0], [1], [0, 0, 1, 1], [], []>} : vector<16x64xbf16>, vector<64x32xbf16>, vector<16x32xf32> -> vector<16x32xf32>
    %c0_22 = arith.constant 0 : index
    %c0_23 = arith.constant 0 : index
    %c0_24 = arith.constant 0 : index
    %22 = vector.load %arg10[%c0_22, %c0_23, %c0_24] : memref<1x1x32xf32, #tpu.memory_space<vmem>>, vector<1x1x32xf32>
    %23 = vector.shape_cast %22 : vector<1x1x32xf32> to vector<1x32xf32>
    %24 = vector.broadcast %23 : vector<1x32xf32> to vector<16x32xf32>
    %25 = arith.addf %21, %24 : vector<16x32xf32>
    %c0_25 = arith.constant 0 : index
    %c0_26 = arith.constant 0 : index
    %c0_27 = arith.constant 0 : index
    %26 = vector.load %arg11[%c0_25, %c0_26, %c0_27] : memref<1x64x32xbf16, #tpu.memory_space<vmem>>, vector<1x64x32xbf16>
    %27 = vector.shape_cast %26 : vector<1x64x32xbf16> to vector<64x32xbf16>
    %cst_28 = arith.constant dense<0.000000e+00> : vector<16x32xf32>
    %28 = tpu.matmul %6, %27, %cst_28 {dimension_numbers = #tpu.dot_dimension_numbers<[1], [0], [0], [1], [0, 0, 1, 1], [], []>} : vector<16x64xbf16>, vector<64x32xbf16>, vector<16x32xf32> -> vector<16x32xf32>
    %c0_29 = arith.constant 0 : index
    %c0_30 = arith.constant 0 : index
    %c0_31 = arith.constant 0 : index
    %29 = vector.load %arg12[%c0_29, %c0_30, %c0_31] : memref<1x1x32xf32, #tpu.memory_space<vmem>>, vector<1x1x32xf32>
    %30 = vector.shape_cast %29 : vector<1x1x32xf32> to vector<1x32xf32>
    %31 = vector.broadcast %30 : vector<1x32xf32> to vector<16x32xf32>
    %32 = arith.addf %28, %31 : vector<16x32xf32>
    %33 = arith.truncf %18 : vector<16x32xf32> to vector<16x32xbf16>
    %34 = arith.truncf %25 : vector<16x32xf32> to vector<16x32xbf16>
    %cst_32 = arith.constant dense<0.000000e+00> : vector<16x16xf32>
    %35 = tpu.matmul %33, %34, %cst_32 {dimension_numbers = #tpu.dot_dimension_numbers<[1], [1], [0], [0], [0, 0, 1, 0], [], []>} : vector<16x32xbf16>, vector<16x32xbf16>, vector<16x16xf32> -> vector<16x16xf32>
    %36 = arith.addf %35, %9 : vector<16x16xf32>
    %cst_33 = arith.constant dense<0xFF800000> : vector<16xf32>
    %37 = vector.multi_reduction <maximumf>, %36, %cst_33 [1] : vector<16x16xf32> to vector<16xf32>
    %38 = vector.shape_cast %37 : vector<16xf32> to vector<16x1xf32>
    %39 = vector.broadcast %38 : vector<16x1xf32> to vector<16x16xf32>
    %40 = arith.subf %36, %39 : vector<16x16xf32>
    %41 = math.exp %40 : vector<16x16xf32>
    %cst_34 = arith.constant dense<0.000000e+00> : vector<16xf32>
    %42 = vector.multi_reduction <add>, %41, %cst_34 [1] : vector<16x16xf32> to vector<16xf32>
    %43 = vector.shape_cast %42 : vector<16xf32> to vector<16x1xf32>
    %44 = tpu.reciprocal %43 {approx = true} : vector<16x1xf32> -> vector<16x1xf32>
    %45 = vector.broadcast %44 : vector<16x1xf32> to vector<16x16xf32>
    %46 = arith.mulf %41, %45 : vector<16x16xf32>
    %47 = arith.truncf %46 : vector<16x16xf32> to vector<16x16xbf16>
    %c0_35 = arith.constant 0 : index
    %c0_36 = arith.constant 0 : index
    %c0_37 = arith.constant 0 : index
    %c0_38 = arith.constant 0 : index
    %48 = vector.load %arg18[%c0_35, %c0_36, %c0_37, %c0_38] : memref<1x1x16x16xbf16, #tpu.memory_space<vmem>>, vector<1x1x16x16xbf16>
    %49 = vector.shape_cast %48 : vector<1x1x16x16xbf16> to vector<16x16xbf16>
    %50 = vector.shape_cast %47 : vector<16x16xbf16> to vector<1x1x16x16xbf16>
    tpu.vector_store %arg18[%c0_35, %c0_36, %c0_37, %c0_38], %50 {strides = array<i32>} : memref<1x1x16x16xbf16, #tpu.memory_space<vmem>>, vector<1x1x16x16xbf16>,
    %51 = arith.truncf %46 : vector<16x16xf32> to vector<16x16xbf16>
    %52 = arith.truncf %32 : vector<16x32xf32> to vector<16x32xbf16>
    %cst_39 = arith.constant dense<0.000000e+00> : vector<16x32xf32>
    %53 = tpu.matmul %51, %52, %cst_39 {dimension_numbers = #tpu.dot_dimension_numbers<[1], [0], [0], [1], [0, 0, 1, 1], [], []>} : vector<16x16xbf16>, vector<16x32xbf16>, vector<16x32xf32> -> vector<16x32xf32>
    %c0_i32 = arith.constant 0 : i32
    %54 = arith.cmpi eq, %arg2, %c0_i32 : i32
    %55 = arith.extui %54 : i1 to i32
    %c0_i32_40 = arith.constant 0 : i32
    %56 = arith.cmpi ne, %55, %c0_i32_40 : i32
    scf.if %56 {
      %cst_50 = arith.constant 0.000000e+00 : f32
      %67 = vector.broadcast %cst_50 : f32 to vector<16x64xf32>
      %c0_51 = arith.constant 0 : index
      %c0_52 = arith.constant 0 : index
      %68 = vector.load %arg19[%c0_51, %c0_52] : memref<16x64xf32, #tpu.memory_space<vmem>>, vector<16x64xf32>
      tpu.vector_store %arg19[%c0_51, %c0_52], %67 {strides = array<i32>} : memref<16x64xf32, #tpu.memory_space<vmem>>, vector<16x64xf32>,
    } else {
    }
    %c0_41 = arith.constant 0 : index
    %c0_42 = arith.constant 0 : index
    %57 = vector.load %arg19[%c0_41, %c0_42] : memref<16x64xf32, #tpu.memory_space<vmem>>, vector<16x64xf32>
    %58 = arith.truncf %53 : vector<16x32xf32> to vector<16x32xbf16>
    %c0_43 = arith.constant 0 : index
    %c0_44 = arith.constant 0 : index
    %c0_45 = arith.constant 0 : index
    %59 = vector.load %arg13[%c0_43, %c0_44, %c0_45] : memref<1x32x64xbf16, #tpu.memory_space<vmem>>, vector<1x32x64xbf16>
    %60 = vector.shape_cast %59 : vector<1x32x64xbf16> to vector<32x64xbf16>
    %cst_46 = arith.constant dense<0.000000e+00> : vector<16x64xf32>
    %61 = tpu.matmul %58, %60, %cst_46 {dimension_numbers = #tpu.dot_dimension_numbers<[1], [0], [0], [1], [0, 0, 1, 1], [], []>} : vector<16x32xbf16>, vector<32x64xbf16>, vector<16x64xf32> -> vector<16x64xf32>
    %62 = arith.addf %57, %61 : vector<16x64xf32>
    %c0_47 = arith.constant 0 : index
    %c0_48 = arith.constant 0 : index
    %63 = vector.load %arg19[%c0_47, %c0_48] : memref<16x64xf32, #tpu.memory_space<vmem>>, vector<16x64xf32>
    tpu.vector_store %arg19[%c0_47, %c0_48], %62 {strides = array<i32>} : memref<16x64xf32, #tpu.memory_space<vmem>>, vector<16x64xf32>,
    %c1_i32 = arith.constant 1 : i32
    %64 = arith.cmpi eq, %arg2, %c1_i32 : i32
    %65 = arith.extui %64 : i1 to i32
    %c0_i32_49 = arith.constant 0 : i32
    %66 = arith.cmpi ne, %65, %c0_i32_49 : i32
    scf.if %66 {
      %c0_50 = arith.constant 0 : index
      %c0_51 = arith.constant 0 : index
      %67 = vector.load %arg19[%c0_50, %c0_51] : memref<16x64xf32, #tpu.memory_space<vmem>>, vector<16x64xf32>
      %c0_52 = arith.constant 0 : index
      %c0_53 = arith.constant 0 : index
      %68 = vector.load %arg14[%c0_52, %c0_53] : memref<1x64xf32, #tpu.memory_space<vmem>>, vector<1x64xf32>
      %69 = vector.broadcast %68 : vector<1x64xf32> to vector<16x64xf32>
      %70 = arith.addf %67, %69 : vector<16x64xf32>
      %71 = arith.addf %70, %1 : vector<16x64xf32>
      %cst_54 = arith.constant dense<0.000000e+00> : vector<16xf32>
      %72 = vector.multi_reduction <add>, %71, %cst_54 [1] : vector<16x64xf32> to vector<16xf32>
      %73 = vector.shape_cast %72 : vector<16xf32> to vector<16x1xf32>
      %cst_55 = arith.constant 6.400000e+01 : f32
      %74 = vector.broadcast %cst_55 : f32 to vector<16x1xf32>
      %75 = arith.divf %73, %74 : vector<16x1xf32>
      %76 = arith.mulf %71, %71 : vector<16x64xf32>
      %cst_56 = arith.constant dense<0.000000e+00> : vector<16xf32>
      %77 = vector.multi_reduction <add>, %76, %cst_56 [1] : vector<16x64xf32> to vector<16xf32>
      %78 = vector.shape_cast %77 : vector<16xf32> to vector<16x1xf32>
      %cst_57 = arith.constant 6.400000e+01 : f32
      %79 = vector.broadcast %cst_57 : f32 to vector<16x1xf32>
      %80 = arith.divf %78, %79 : vector<16x1xf32>
      %81 = arith.mulf %75, %75 : vector<16x1xf32>
      %82 = arith.subf %80, %81 : vector<16x1xf32>
      %83 = vector.broadcast %75 : vector<16x1xf32> to vector<16x64xf32>
      %84 = arith.subf %71, %83 : vector<16x64xf32>
      %cst_58 = arith.constant 9.99999974E-6 : f32
      %85 = vector.broadcast %cst_58 : f32 to vector<16x1xf32>
      %86 = arith.addf %82, %85 : vector<16x1xf32>
      %87 = math.rsqrt %86 : vector<16x1xf32>
      %88 = vector.broadcast %87 : vector<16x1xf32> to vector<16x64xf32>
      %89 = arith.mulf %84, %88 : vector<16x64xf32>
      %c0_59 = arith.constant 0 : index
      %c0_60 = arith.constant 0 : index
      %90 = vector.load %arg15[%c0_59, %c0_60] : memref<1x64xf32, #tpu.memory_space<vmem>>, vector<1x64xf32>
      %91 = vector.broadcast %90 : vector<1x64xf32> to vector<16x64xf32>
      %92 = arith.mulf %89, %91 : vector<16x64xf32>
      %c0_61 = arith.constant 0 : index
      %c0_62 = arith.constant 0 : index
      %93 = vector.load %arg16[%c0_61, %c0_62] : memref<1x64xf32, #tpu.memory_space<vmem>>, vector<1x64xf32>
      %94 = vector.broadcast %93 : vector<1x64xf32> to vector<16x64xf32>
      %95 = arith.addf %92, %94 : vector<16x64xf32>
      %c0_63 = arith.constant 0 : index
      %c0_64 = arith.constant 0 : index
      %c0_65 = arith.constant 0 : index
      %96 = vector.load %arg17[%c0_63, %c0_64, %c0_65] : memref<1x16x64xf32, #tpu.memory_space<vmem>>, vector<1x16x64xf32>
      %97 = vector.shape_cast %96 : vector<1x16x64xf32> to vector<16x64xf32>
      %98 = vector.shape_cast %95 : vector<16x64xf32> to vector<1x16x64xf32>
      tpu.vector_store %arg17[%c0_63, %c0_64, %c0_65], %98 {strides = array<i32>} : memref<1x16x64xf32, #tpu.memory_space<vmem>>, vector<1x16x64xf32>,
    } else {
    }
    return
  }
  func.func @transform_0(%arg0: i32, %arg1: i32, %arg2: i32) -> (i32, i32, i32) {
    %c0_i32 = arith.constant 0 : i32
    %c0_i32_0 = arith.constant 0 : i32
    return %arg0, %arg1, %c0_i32 : i32, i32, i32
  }
  func.func @transform_1(%arg0: i32, %arg1: i32, %arg2: i32) -> (i32, i32, i32) {
    %c0_i32 = arith.constant 0 : i32
    %c0_i32_0 = arith.constant 0 : i32
    %c0_i32_1 = arith.constant 0 : i32
    return %arg0, %c0_i32, %c0_i32_0 : i32, i32, i32
  }
  func.func @transform_2(%arg0: i32, %arg1: i32, %arg2: i32) -> (i32, i32, i32) {
    %c0_i32 = arith.constant 0 : i32
    %c0_i32_0 = arith.constant 0 : i32
    %c0_i32_1 = arith.constant 0 : i32
    return %arg0, %c0_i32, %c0_i32_0 : i32, i32, i32
  }
  func.func @transform_3(%arg0: i32, %arg1: i32, %arg2: i32) -> (i32, i32, i32) {
    %c0_i32 = arith.constant 0 : i32
    %c0_i32_0 = arith.constant 0 : i32
    return %arg0, %arg1, %c0_i32 : i32, i32, i32
  }
  func.func @transform_4(%arg0: i32, %arg1: i32, %arg2: i32) -> (i32, i32, i32) {
    %c0_i32 = arith.constant 0 : i32
    %c0_i32_0 = arith.constant 0 : i32
    %c0_i32_1 = arith.constant 0 : i32
    return %arg2, %c0_i32, %c0_i32_0 : i32, i32, i32
  }
  func.func @transform_5(%arg0: i32, %arg1: i32, %arg2: i32) -> (i32, i32, i32) {
    %c0_i32 = arith.constant 0 : i32
    %c0_i32_0 = arith.constant 0 : i32
    %c0_i32_1 = arith.constant 0 : i32
    return %arg2, %c0_i32, %c0_i32_0 : i32, i32, i32
  }
  func.func @transform_6(%arg0: i32, %arg1: i32, %arg2: i32) -> (i32, i32, i32) {
    %c0_i32 = arith.constant 0 : i32
    %c0_i32_0 = arith.constant 0 : i32
    %c0_i32_1 = arith.constant 0 : i32
    return %arg2, %c0_i32, %c0_i32_0 : i32, i32, i32
  }
  func.func @transform_7(%arg0: i32, %arg1: i32, %arg2: i32) -> (i32, i32, i32) {
    %c0_i32 = arith.constant 0 : i32
    %c0_i32_0 = arith.constant 0 : i32
    %c0_i32_1 = arith.constant 0 : i32
    return %arg2, %c0_i32, %c0_i32_0 : i32, i32, i32
  }
  func.func @transform_8(%arg0: i32, %arg1: i32, %arg2: i32) -> (i32, i32, i32) {
    %c0_i32 = arith.constant 0 : i32
    %c0_i32_0 = arith.constant 0 : i32
    %c0_i32_1 = arith.constant 0 : i32
    return %arg2, %c0_i32, %c0_i32_0 : i32, i32, i32
  }
  func.func @transform_9(%arg0: i32, %arg1: i32, %arg2: i32) -> (i32, i32, i32) {
    %c0_i32 = arith.constant 0 : i32
    %c0_i32_0 = arith.constant 0 : i32
    %c0_i32_1 = arith.constant 0 : i32
    return %arg2, %c0_i32, %c0_i32_0 : i32, i32, i32
  }
  func.func @transform_10(%arg0: i32, %arg1: i32, %arg2: i32) -> (i32, i32, i32) {
    %c0_i32 = arith.constant 0 : i32
    %c0_i32_0 = arith.constant 0 : i32
    %c0_i32_1 = arith.constant 0 : i32
    return %arg2, %c0_i32, %c0_i32_0 : i32, i32, i32
  }
  func.func @transform_11(%arg0: i32, %arg1: i32, %arg2: i32) -> (i32, i32) {
    %c0_i32 = arith.constant 0 : i32
    %c0_i32_0 = arith.constant 0 : i32
    %c0_i32_1 = arith.constant 0 : i32
    return %c0_i32, %c0_i32_0 : i32, i32
  }
  func.func @transform_12(%arg0: i32, %arg1: i32, %arg2: i32) -> (i32, i32) {
    %c0_i32 = arith.constant 0 : i32
    %c0_i32_0 = arith.constant 0 : i32
    %c0_i32_1 = arith.constant 0 : i32
    return %c0_i32, %c0_i32_0 : i32, i32
  }
  func.func @transform_13(%arg0: i32, %arg1: i32, %arg2: i32) -> (i32, i32) {
    %c0_i32 = arith.constant 0 : i32
    %c0_i32_0 = arith.constant 0 : i32
    %c0_i32_1 = arith.constant 0 : i32
    return %c0_i32, %c0_i32_0 : i32, i32
  }
  func.func @transform_14(%arg0: i32, %arg1: i32, %arg2: i32) -> (i32, i32, i32) {
    %c0_i32 = arith.constant 0 : i32
    %c0_i32_0 = arith.constant 0 : i32
    return %arg0, %arg1, %c0_i32 : i32, i32, i32
  }
  func.func @transform_15(%arg0: i32, %arg1: i32, %arg2: i32) -> (i32, i32, i32, i32) {
    %c0_i32 = arith.constant 0 : i32
    %c0_i32_0 = arith.constant 0 : i32
    return %arg2, %arg0, %arg1, %c0_i32 : i32, i32, i32, i32
  }
}

</mosaic_0001>

<llo_original>
// kernel: tpu_custom_call.1
$region0: #{tpu_custom_call.1}
  #allocation0 [shape = 'u32[]', space=smem, size = 0x4, offset = 0x4, fixed_abs, tag = 'smem constant byte address 0x4 - core index']
  #allocation1 [shape = 'u32[144,128]{1,0:T(1,128)}', space=vmem, size = 0x12000, scoped, tag = 'internal scratch']
  #allocation2 [shape = 'f32[16,64]{1,0:T(8,128)}', space=vmem, size = 0x2000, scoped, tag = 'scratch operand']
  %s0 = inlined_call_operand.vmem [shape: f32[2,16,64], index: 0, kind: input, shape index: {}]
  %s1 = inlined_call_operand.vmem [shape: bf16[2,16,64], index: 1, kind: input, shape index: {}]
  %s2 = inlined_call_operand.vmem [shape: bf16[2,16,64], index: 2, kind: input, shape index: {}]
  %s3 = inlined_call_operand.vmem [shape: bf16[2,16,16], index: 3, kind: input, shape index: {}]
  %s4 = inlined_call_operand.vmem [shape: bf16[2,64,32], index: 4, kind: input, shape index: {}]
  %s5 = inlined_call_operand.vmem [shape: f32[2,1,32], index: 5, kind: input, shape index: {}]
  %s6 = inlined_call_operand.vmem [shape: bf16[2,64,32], index: 6, kind: input, shape index: {}]
  %s7 = inlined_call_operand.vmem [shape: f32[2,1,32], index: 7, kind: input, shape index: {}]
  %s8 = inlined_call_operand.vmem [shape: bf16[2,64,32], index: 8, kind: input, shape index: {}]
  %s9 = inlined_call_operand.vmem [shape: f32[2,1,32], index: 9, kind: input, shape index: {}]
  %s10 = inlined_call_operand.vmem [shape: bf16[2,32,64], index: 10, kind: input, shape index: {}]
  %s11 = inlined_call_operand.vmem [shape: f32[1,64], index: 11, kind: input, shape index: {}]
  %s12 = inlined_call_operand.vmem [shape: f32[1,64], index: 12, kind: input, shape index: {}]
  %s13 = inlined_call_operand.vmem [shape: f32[1,64], index: 13, kind: input, shape index: {}]
  %s14 = inlined_call_operand.hbm [shape: f32[2,16,64], index: 14, kind: output, shape index: {0}]
  %s15 = inlined_call_operand.hbm [shape: bf16[2,2,16,16], index: 15, kind: output, shape index: {1}]
  %16 = xla_tuple %s14, %s15
  %s17 = sld [smem:[#allocation0]]
  $region105: #{tpu_custom_call.1} parent=0
    _
  %s19 = ssub.s32 1, %s17
  %s20 = scalar_select 0, %s19, %s17
  $region1: #{tpu_custom_call.1} parent=0
    #allocation3 [shape = 'u8[16384]{0}', space=vmem, size = 0x4000, scoped, tag = 'output window, operand 0']
    #allocation4 [shape = 's32[2]{0}', space=sflag, size = 0x8, scoped, tag = 'scoped memory for tpu_custom_call.1']
    #allocation5 [shape = 'u8[8192]{0}', space=vmem, size = 0x2000, scoped, tag = 'output window, operand 1']
    #allocation6 [shape = 's32[2]{0}', space=sflag, size = 0x8, scoped, tag = 'scoped memory for tpu_custom_call.1']
    %21 = vsyncpa [#allocation4], 0
    %s22 = scalar_lea.sflag [#allocation4], 1
    %23 = vsyncpa %s22, 0
    %24 = vsyncpa [#allocation6], 0
    %s25 = scalar_lea.sflag [#allocation6], 1
    %26 = vsyncpa %s25, 0
    loop: start=0, step=1, limit=6
    $region2: #{tpu_custom_call.1} parent=1 // loop_pre_header
      _
    $region3: #{tpu_custom_call.1} parent=1 // loop_header
      %s28 = sphi 0, %s32
      %p29 = scmp.ge.s32.totalorder %s28, 6
      %s35 = sphi 0, %s54
      %s36 = sphi 0, %s50
      %s37 = sphi 0, %s46
      %s38 = sphi 0, %s35
      %s39 = sphi 0, %s36
      %s40 = sphi 0, %s37
      %s41 = sphi 0, %s38
      %s42 = sphi 0, %s39
      %s43 = sphi 0, %s40
      %s59 = sphi 0, %s61
      %s62 = sphi 0, %s59
      %s63 = sphi 0, %s62
      %s79 = sphi 0, %s63
      %s85 = sphi 0, %s87
      %s88 = sphi 0, %s85
      %s89 = sphi 0, %s88
      %s105 = sphi 0, %s89
      %s111 = sphi 0, %s113
      %s114 = sphi 0, %s111
      %s115 = sphi 0, %s114
      %s131 = sphi 0, %s115
      %s139 = sphi 0, %s141
      %s142 = sphi 0, %s139
      %s143 = sphi 0, %s142
      %s159 = sphi 0, %s143
      %s165 = sphi 0, %s167
      %s168 = sphi 0, %s165
      %s169 = sphi 0, %s168
      %s185 = sphi 0, %s169
      %s191 = sphi 0, %s193
      %s194 = sphi 0, %s191
      %s195 = sphi 0, %s194
      %s211 = sphi 0, %s195
      %s217 = sphi 0, %s219
      %s220 = sphi 0, %s217
      %s221 = sphi 0, %s220
      %s237 = sphi 0, %s221
      %s243 = sphi 0, %s245
      %s246 = sphi 0, %s243
      %s247 = sphi 0, %s246
      %s263 = sphi 0, %s247
      %s269 = sphi 0, %s271
      %s272 = sphi 0, %s269
      %s273 = sphi 0, %s272
      %s289 = sphi 0, %s273
      %s295 = sphi 0, %s297
      %s298 = sphi 0, %s295
      %s299 = sphi 0, %s298
      %s315 = sphi 0, %s299
      %s321 = sphi 0, %s323
      %s324 = sphi 0, %s321
      %s325 = sphi 0, %s324
      %s341 = sphi 0, %s325
      %s345 = sphi 0, %s345
      %s347 = sphi 0, %s345
      %s348 = sphi 0, %s347
      %s362 = sphi 0, %s348
      %s366 = sphi 0, %s366
      %s368 = sphi 0, %s366
      %s369 = sphi 0, %s368
      %s383 = sphi 0, %s369
      %s387 = sphi 0, %s387
      %s389 = sphi 0, %s387
      %s390 = sphi 0, %s389
      %s404 = sphi 0, %s390
      %s412 = sphi 0, %s414
      %s415 = sphi 0, %s412
      %s416 = sphi 0, %s415
      %s432 = sphi 0, %s416
      %s442 = sphi 0, %s444
      %s445 = sphi 0, %s442
      %s446 = sphi 0, %s445
      %s462 = sphi 0, %s446
    $region4: #{tpu_custom_call.1} parent=1 // loop_header_branch
      %31 = sbr.rel (%p29) target = $region8
    $region5: #{tpu_custom_call.1} parent=1 // loop_body
      %s33 = ssub.s32 %s28, 1
      %s34 = ssub.s32 %s28, 2
      %s44 = sadd.s32 1, %s37
      %p45 = scmp.ge.s32.totalorder %s44, 2
      %s46 = scalar_select %p45, 0, %s44
      %s47 = sadd.s32 1, %s36
      %s48 = scalar_select %p45, %s47, %s36
      %p49 = scmp.ge.s32.totalorder %s48, 1
      %s50 = scalar_select %p49, 0, %s48
      %s51 = sadd.s32 1, %s35
      %s52 = scalar_select %p49, %s51, %s35
      %p53 = scmp.ge.s32.totalorder %s52, 2
      %s54 = scalar_select %p53, 0, %s52
      %s55 = ssub.s32 %s35, %s54
      %s56 = ssub.s32 %s36, %s50
      %s57 = sor.u32 %s55, %s56
      %p58 = scmp.eq.s32.totalorder %s57, 0
      %s60 = sadd.s32 %s59, 1
      %s61 = scalar_select %p58, %s59, %s60
      %p64 = pneg %p58
      %p65 = scmp.eq.s32.totalorder %s28, 3
      %p66 = por %p64, %p65
      %p67 = scmp.ne.s32.totalorder %s59, %s62
      %p68 = scmp.eq.s32.totalorder %s28, 0
      %p69 = por %p67, %p68
      %p70 = scmp.ne.s32.totalorder %s59, %s62
      %p71 = scmp.eq.s32.totalorder %s33, 3
      %p72 = por %p70, %p71
      %p73 = scmp.ne.s32.totalorder %s62, %s63
      %p74 = scmp.eq.s32.totalorder %s33, 0
      %p75 = por %p73, %p74
      %p76 = scmp.ne.s32.totalorder %s62, %s63
      %p77 = scmp.eq.s32.totalorder %s34, 3
      %p78 = por %p76, %p77
      %p80 = scmp.ne.s32.totalorder %s63, %s79
      %p81 = scmp.eq.s32.totalorder %s34, 0
      %p82 = por %p80, %p81
      %s83 = ssub.s32 %s35, %s54
      %p84 = scmp.eq.s32.totalorder %s83, 0
      %s86 = sadd.s32 %s85, 1
      %s87 = scalar_select %p84, %s85, %s86
      %p90 = pneg %p84
      %p91 = scmp.eq.s32.totalorder %s28, 3
      %p92 = por %p90, %p91
      %p93 = scmp.ne.s32.totalorder %s85, %s88
      %p94 = scmp.eq.s32.totalorder %s28, 0
      %p95 = por %p93, %p94
      %p96 = scmp.ne.s32.totalorder %s85, %s88
      %p97 = scmp.eq.s32.totalorder %s33, 3
      %p98 = por %p96, %p97
      %p99 = scmp.ne.s32.totalorder %s88, %s89
      %p100 = scmp.eq.s32.totalorder %s33, 0
      %p101 = por %p99, %p100
      %p102 = scmp.ne.s32.totalorder %s88, %s89
      %p103 = scmp.eq.s32.totalorder %s34, 3
      %p104 = por %p102, %p103
      %p106 = scmp.ne.s32.totalorder %s89, %s105
      %p107 = scmp.eq.s32.totalorder %s34, 0
      %p108 = por %p106, %p107
      %s109 = ssub.s32 %s35, %s54
      %p110 = scmp.eq.s32.totalorder %s109, 0
      %s112 = sadd.s32 %s111, 1
      %s113 = scalar_select %p110, %s111, %s112
      %p116 = pneg %p110
      %p117 = scmp.eq.s32.totalorder %s28, 3
      %p118 = por %p116, %p117
      %p119 = scmp.ne.s32.totalorder %s111, %s114
      %p120 = scmp.eq.s32.totalorder %s28, 0
      %p121 = por %p119, %p120
      %p122 = scmp.ne.s32.totalorder %s111, %s114
      %p123 = scmp.eq.s32.totalorder %s33, 3
      %p124 = por %p122, %p123
      %p125 = scmp.ne.s32.totalorder %s114, %s115
      %p126 = scmp.eq.s32.totalorder %s33, 0
      %p127 = por %p125, %p126
      %p128 = scmp.ne.s32.totalorder %s114, %s115
      %p129 = scmp.eq.s32.totalorder %s34, 3
      %p130 = por %p128, %p129
      %p132 = scmp.ne.s32.totalorder %s115, %s131
      %p133 = scmp.eq.s32.totalorder %s34, 0
      %p134 = por %p132, %p133
      %s135 = ssub.s32 %s35, %s54
      %s136 = ssub.s32 %s36, %s50
      %s137 = sor.u32 %s135, %s136
      %p138 = scmp.eq.s32.totalorder %s137, 0
      %s140 = sadd.s32 %s139, 1
      %s141 = scalar_select %p138, %s139, %s140
      %p144 = pneg %p138
      %p145 = scmp.eq.s32.totalorder %s28, 3
      %p146 = por %p144, %p145
      %p147 = scmp.ne.s32.totalorder %s139, %s142
      %p148 = scmp.eq.s32.totalorder %s28, 0
      %p149 = por %p147, %p148
      %p150 = scmp.ne.s32.totalorder %s139, %s142
      %p151 = scmp.eq.s32.totalorder %s33, 3
      %p152 = por %p150, %p151
      %p153 = scmp.ne.s32.totalorder %s142, %s143
      %p154 = scmp.eq.s32.totalorder %s33, 0
      %p155 = por %p153, %p154
      %p156 = scmp.ne.s32.totalorder %s142, %s143
      %p157 = scmp.eq.s32.totalorder %s34, 3
      %p158 = por %p156, %p157
      %p160 = scmp.ne.s32.totalorder %s143, %s159
      %p161 = scmp.eq.s32.totalorder %s34, 0
      %p162 = por %p160, %p161
      %s163 = ssub.s32 %s37, %s46
      %p164 = scmp.eq.s32.totalorder %s163, 0
      %s166 = sadd.s32 %s165, 1
      %s167 = scalar_select %p164, %s165, %s166
      %p170 = pneg %p164
      %p171 = scmp.eq.s32.totalorder %s28, 3
      %p172 = por %p170, %p171
      %p173 = scmp.ne.s32.totalorder %s165, %s168
      %p174 = scmp.eq.s32.totalorder %s28, 0
      %p175 = por %p173, %p174
      %p176 = scmp.ne.s32.totalorder %s165, %s168
      %p177 = scmp.eq.s32.totalorder %s33, 3
      %p178 = por %p176, %p177
      %p179 = scmp.ne.s32.totalorder %s168, %s169
      %p180 = scmp.eq.s32.totalorder %s33, 0
      %p181 = por %p179, %p180
      %p182 = scmp.ne.s32.totalorder %s168, %s169
      %p183 = scmp.eq.s32.totalorder %s34, 3
      %p184 = por %p182, %p183
      %p186 = scmp.ne.s32.totalorder %s169, %s185
      %p187 = scmp.eq.s32.totalorder %s34, 0
      %p188 = por %p186, %p187
      %s189 = ssub.s32 %s37, %s46
      %p190 = scmp.eq.s32.totalorder %s189, 0
      %s192 = sadd.s32 %s191, 1
      %s193 = scalar_select %p190, %s191, %s192
      %p196 = pneg %p190
      %p197 = scmp.eq.s32.totalorder %s28, 3
      %p198 = por %p196, %p197
      %p199 = scmp.ne.s32.totalorder %s191, %s194
      %p200 = scmp.eq.s32.totalorder %s28, 0
      %p201 = por %p199, %p200
      %p202 = scmp.ne.s32.totalorder %s191, %s194
      %p203 = scmp.eq.s32.totalorder %s33, 3
      %p204 = por %p202, %p203
      %p205 = scmp.ne.s32.totalorder %s194, %s195
      %p206 = scmp.eq.s32.totalorder %s33, 0
      %p207 = por %p205, %p206
      %p208 = scmp.ne.s32.totalorder %s194, %s195
      %p209 = scmp.eq.s32.totalorder %s34, 3
      %p210 = por %p208, %p209
      %p212 = scmp.ne.s32.totalorder %s195, %s211
      %p213 = scmp.eq.s32.totalorder %s34, 0
      %p214 = por %p212, %p213
      %s215 = ssub.s32 %s37, %s46
      %p216 = scmp.eq.s32.totalorder %s215, 0
      %s218 = sadd.s32 %s217, 1
      %s219 = scalar_select %p216, %s217, %s218
      %p222 = pneg %p216
      %p223 = scmp.eq.s32.totalorder %s28, 3
      %p224 = por %p222, %p223
      %p225 = scmp.ne.s32.totalorder %s217, %s220
      %p226 = scmp.eq.s32.totalorder %s28, 0
      %p227 = por %p225, %p226
      %p228 = scmp.ne.s32.totalorder %s217, %s220
      %p229 = scmp.eq.s32.totalorder %s33, 3
      %p230 = por %p228, %p229
      %p231 = scmp.ne.s32.totalorder %s220, %s221
      %p232 = scmp.eq.s32.totalorder %s33, 0
      %p233 = por %p231, %p232
      %p234 = scmp.ne.s32.totalorder %s220, %s221
      %p235 = scmp.eq.s32.totalorder %s34, 3
      %p236 = por %p234, %p235
      %p238 = scmp.ne.s32.totalorder %s221, %s237
      %p239 = scmp.eq.s32.totalorder %s34, 0
      %p240 = por %p238, %p239
      %s241 = ssub.s32 %s37, %s46
      %p242 = scmp.eq.s32.totalorder %s241, 0
      %s244 = sadd.s32 %s243, 1
      %s245 = scalar_select %p242, %s243, %s244
      %p248 = pneg %p242
      %p249 = scmp.eq.s32.totalorder %s28, 3
      %p250 = por %p248, %p249
      %p251 = scmp.ne.s32.totalorder %s243, %s246
      %p252 = scmp.eq.s32.totalorder %s28, 0
      %p253 = por %p251, %p252
      %p254 = scmp.ne.s32.totalorder %s243, %s246
      %p255 = scmp.eq.s32.totalorder %s33, 3
      %p256 = por %p254, %p255
      %p257 = scmp.ne.s32.totalorder %s246, %s247
      %p258 = scmp.eq.s32.totalorder %s33, 0
      %p259 = por %p257, %p258
      %p260 = scmp.ne.s32.totalorder %s246, %s247
      %p261 = scmp.eq.s32.totalorder %s34, 3
      %p262 = por %p260, %p261
      %p264 = scmp.ne.s32.totalorder %s247, %s263
      %p265 = scmp.eq.s32.totalorder %s34, 0
      %p266 = por %p264, %p265
      %s267 = ssub.s32 %s37, %s46
      %p268 = scmp.eq.s32.totalorder %s267, 0
      %s270 = sadd.s32 %s269, 1
      %s271 = scalar_select %p268, %s269, %s270
      %p274 = pneg %p268
      %p275 = scmp.eq.s32.totalorder %s28, 3
      %p276 = por %p274, %p275
      %p277 = scmp.ne.s32.totalorder %s269, %s272
      %p278 = scmp.eq.s32.totalorder %s28, 0
      %p279 = por %p277, %p278
      %p280 = scmp.ne.s32.totalorder %s269, %s272
      %p281 = scmp.eq.s32.totalorder %s33, 3
      %p282 = por %p280, %p281
      %p283 = scmp.ne.s32.totalorder %s272, %s273
      %p284 = scmp.eq.s32.totalorder %s33, 0
      %p285 = por %p283, %p284
      %p286 = scmp.ne.s32.totalorder %s272, %s273
      %p287 = scmp.eq.s32.totalorder %s34, 3
      %p288 = por %p286, %p287
      %p290 = scmp.ne.s32.totalorder %s273, %s289
      %p291 = scmp.eq.s32.totalorder %s34, 0
      %p292 = por %p290, %p291
      %s293 = ssub.s32 %s37, %s46
      %p294 = scmp.eq.s32.totalorder %s293, 0
      %s296 = sadd.s32 %s295, 1
      %s297 = scalar_select %p294, %s295, %s296
      %p300 = pneg %p294
      %p301 = scmp.eq.s32.totalorder %s28, 3
      %p302 = por %p300, %p301
      %p303 = scmp.ne.s32.totalorder %s295, %s298
      %p304 = scmp.eq.s32.totalorder %s28, 0
      %p305 = por %p303, %p304
      %p306 = scmp.ne.s32.totalorder %s295, %s298
      %p307 = scmp.eq.s32.totalorder %s33, 3
      %p308 = por %p306, %p307
      %p309 = scmp.ne.s32.totalorder %s298, %s299
      %p310 = scmp.eq.s32.totalorder %s33, 0
      %p311 = por %p309, %p310
      %p312 = scmp.ne.s32.totalorder %s298, %s299
      %p313 = scmp.eq.s32.totalorder %s34, 3
      %p314 = por %p312, %p313
      %p316 = scmp.ne.s32.totalorder %s299, %s315
      %p317 = scmp.eq.s32.totalorder %s34, 0
      %p318 = por %p316, %p317
      %s319 = ssub.s32 %s37, %s46
      %p320 = scmp.eq.s32.totalorder %s319, 0
      %s322 = sadd.s32 %s321, 1
      %s323 = scalar_select %p320, %s321, %s322
      %p326 = pneg %p320
      %p327 = scmp.eq.s32.totalorder %s28, 3
      %p328 = por %p326, %p327
      %p329 = scmp.ne.s32.totalorder %s321, %s324
      %p330 = scmp.eq.s32.totalorder %s28, 0
      %p331 = por %p329, %p330
      %p332 = scmp.ne.s32.totalorder %s321, %s324
      %p333 = scmp.eq.s32.totalorder %s33, 3
      %p334 = por %p332, %p333
      %p335 = scmp.ne.s32.totalorder %s324, %s325
      %p336 = scmp.eq.s32.totalorder %s33, 0
      %p337 = por %p335, %p336
      %p338 = scmp.ne.s32.totalorder %s324, %s325
      %p339 = scmp.eq.s32.totalorder %s34, 3
      %p340 = por %p338, %p339
      %p342 = scmp.ne.s32.totalorder %s325, %s341
      %p343 = scmp.eq.s32.totalorder %s34, 0
      %p344 = por %p342, %p343
      %s346 = sadd.s32 %s345, 1
      %p349 = scmp.eq.s32.totalorder %s28, 3
      %p350 = scmp.ne.s32.totalorder %s345, %s347
      %p351 = scmp.eq.s32.totalorder %s28, 0
      %p352 = por %p350, %p351
      %p353 = scmp.ne.s32.totalorder %s345, %s347
      %p354 = scmp.eq.s32.totalorder %s33, 3
      %p355 = por %p353, %p354
      %p356 = scmp.ne.s32.totalorder %s347, %s348
      %p357 = scmp.eq.s32.totalorder %s33, 0
      %p358 = por %p356, %p357
      %p359 = scmp.ne.s32.totalorder %s347, %s348
      %p360 = scmp.eq.s32.totalorder %s34, 3
      %p361 = por %p359, %p360
      %p363 = scmp.ne.s32.totalorder %s348, %s362
      %p364 = scmp.eq.s32.totalorder %s34, 0
      %p365 = por %p363, %p364
      %s367 = sadd.s32 %s366, 1
      %p370 = scmp.eq.s32.totalorder %s28, 3
      %p371 = scmp.ne.s32.totalorder %s366, %s368
      %p372 = scmp.eq.s32.totalorder %s28, 0
      %p373 = por %p371, %p372
      %p374 = scmp.ne.s32.totalorder %s366, %s368
      %p375 = scmp.eq.s32.totalorder %s33, 3
      %p376 = por %p374, %p375
      %p377 = scmp.ne.s32.totalorder %s368, %s369
      %p378 = scmp.eq.s32.totalorder %s33, 0
      %p379 = por %p377, %p378
      %p380 = scmp.ne.s32.totalorder %s368, %s369
      %p381 = scmp.eq.s32.totalorder %s34, 3
      %p382 = por %p380, %p381
      %p384 = scmp.ne.s32.totalorder %s369, %s383
      %p385 = scmp.eq.s32.totalorder %s34, 0
      %p386 = por %p384, %p385
      %s388 = sadd.s32 %s387, 1
      %p391 = scmp.eq.s32.totalorder %s28, 3
      %p392 = scmp.ne.s32.totalorder %s387, %s389
      %p393 = scmp.eq.s32.totalorder %s28, 0
      %p394 = por %p392, %p393
      %p395 = scmp.ne.s32.totalorder %s387, %s389
      %p396 = scmp.eq.s32.totalorder %s33, 3
      %p397 = por %p395, %p396
      %p398 = scmp.ne.s32.totalorder %s389, %s390
      %p399 = scmp.eq.s32.totalorder %s33, 0
      %p400 = por %p398, %p399
      %p401 = scmp.ne.s32.totalorder %s389, %s390
      %p402 = scmp.eq.s32.totalorder %s34, 3
      %p403 = por %p401, %p402
      %p405 = scmp.ne.s32.totalorder %s390, %s404
      %p406 = scmp.eq.s32.totalorder %s34, 0
      %p407 = por %p405, %p406
      %s408 = ssub.s32 %s35, %s54
      %s409 = ssub.s32 %s36, %s50
      %s410 = sor.u32 %s408, %s409
      %p411 = scmp.eq.s32.totalorder %s410, 0
      %s413 = sadd.s32 %s412, 1
      %s414 = scalar_select %p411, %s412, %s413
      %p417 = pneg %p411
      %p418 = scmp.eq.s32.totalorder %s28, 3
      %p419 = por %p417, %p418
      %p420 = scmp.ne.s32.totalorder %s412, %s415
      %p421 = scmp.eq.s32.totalorder %s28, 0
      %p422 = por %p420, %p421
      %p423 = scmp.ne.s32.totalorder %s412, %s415
      %p424 = scmp.eq.s32.totalorder %s33, 3
      %p425 = por %p423, %p424
      %p426 = scmp.ne.s32.totalorder %s415, %s416
      %p427 = scmp.eq.s32.totalorder %s33, 0
      %p428 = por %p426, %p427
      %p429 = scmp.ne.s32.totalorder %s415, %s416
      %p430 = scmp.eq.s32.totalorder %s34, 3
      %p431 = por %p429, %p430
      %p433 = scmp.ne.s32.totalorder %s416, %s432
      %p434 = scmp.eq.s32.totalorder %s34, 0
      %p435 = por %p433, %p434
      %s436 = ssub.s32 %s37, %s46
      %s437 = ssub.s32 %s35, %s54
      %s438 = sor.u32 %s436, %s437
      %s439 = ssub.s32 %s36, %s50
      %s440 = sor.u32 %s438, %s439
      %p441 = scmp.eq.s32.totalorder %s440, 0
      %s443 = sadd.s32 %s442, 1
      %s444 = scalar_select %p441, %s442, %s443
      %p447 = pneg %p441
      %p448 = scmp.eq.s32.totalorder %s28, 3
      %p449 = por %p447, %p448
      %p450 = scmp.ne.s32.totalorder %s442, %s445
      %p451 = scmp.eq.s32.totalorder %s28, 0
      %p452 = por %p450, %p451
      %p453 = scmp.ne.s32.totalorder %s442, %s445
      %p454 = scmp.eq.s32.totalorder %s33, 3
      %p455 = por %p453, %p454
      %p456 = scmp.ne.s32.totalorder %s445, %s446
      %p457 = scmp.eq.s32.totalorder %s33, 0
      %p458 = por %p456, %p457
      %p459 = scmp.ne.s32.totalorder %s445, %s446
      %p460 = scmp.eq.s32.totalorder %s34, 3
      %p461 = por %p459, %p460
      %p463 = scmp.ne.s32.totalorder %s446, %s462
      %p464 = scmp.eq.s32.totalorder %s34, 0
      %p465 = por %p463, %p464
      %p466 = scmp.le.s32.totalorder 1, %s28
      %p467 = scmp.lt.s32.totalorder %s28, 5
      %p468 = pnand %p466, %p467
      %p469 = pneg %p468
      // Predicated region
      $region9: #{tpu_custom_call.1} parent=5 // pred_check
        _
      $region10: #{tpu_custom_call.1} parent=5 // pred_check_branch
        %471 = sbr.rel (%p468) target = $region12
      $region11: #{tpu_custom_call.1} parent=5 // pred_region
        %s472 = ssub.s32 %s28, 1
        // Predicated region
        $region13: #{tpu_custom_call.1} parent=11 // pred_check
          %p473 = pneg %p358
        $region14: #{tpu_custom_call.1} parent=11 // pred_check_branch
          %475 = sbr.rel (%p473) target = $region16
        $region15: #{tpu_custom_call.1} parent=11 // pred_region
          _
        $region16: #{tpu_custom_call.1} parent=11 // pred_fallthru
          _
        // Predicated region
        $region17: #{tpu_custom_call.1} parent=11 // pred_check
          %p476 = pneg %p379
        $region18: #{tpu_custom_call.1} parent=11 // pred_check_branch
          %478 = sbr.rel (%p476) target = $region20
        $region19: #{tpu_custom_call.1} parent=11 // pred_region
          _
        $region20: #{tpu_custom_call.1} parent=11 // pred_fallthru
          _
        // Predicated region
        $region21: #{tpu_custom_call.1} parent=11 // pred_check
          %p479 = pneg %p400
        $region22: #{tpu_custom_call.1} parent=11 // pred_check_branch
          %481 = sbr.rel (%p479) target = $region24
        $region23: #{tpu_custom_call.1} parent=11 // pred_region
          _
        $region24: #{tpu_custom_call.1} parent=11 // pred_fallthru
          _
      $region12: #{tpu_custom_call.1} parent=5 // pred_fallthru
        _
      %p482 = scmp.lt.s32.totalorder %s28, 4
      // Predicated region
      $region25: #{tpu_custom_call.1} parent=5 // pred_check
        %p483 = pneg %p482
      $region26: #{tpu_custom_call.1} parent=5 // pred_check_branch
        %485 = sbr.rel (%p483) target = $region28
      $region27: #{tpu_custom_call.1} parent=5 // pred_region
        // Predicated region
        $region29: #{tpu_custom_call.1} parent=27 // pred_check
          %p486 = pneg %p69
        $region30: #{tpu_custom_call.1} parent=27 // pred_check_branch
          %488 = sbr.rel (%p486) target = $region32
        $region31: #{tpu_custom_call.1} parent=27 // pred_region
          %s489 = smul.u32 2, %s36
          %p490 = scmp.lt.s32.totalorder %s35, 1
          %s491 = scalar_select %p490, %s35, 1
          %p492 = scmp.lt.s32.totalorder %s489, 1
          %s493 = scalar_select %p492, %s489, 1
          %s494 = smul.addr %s491, 2
          %s495 = sadd.s32 %s493, %s494
          %s496 = smul.addr %s495, 8
          %s497 = scalar_lea.vmem %s0, %s496
          %s498 = smul.u32 2, %s36
        $region32: #{tpu_custom_call.1} parent=27 // pred_fallthru
          _
        // Predicated region
        $region33: #{tpu_custom_call.1} parent=27 // pred_check
          %p499 = pneg %p95
        $region34: #{tpu_custom_call.1} parent=27 // pred_check_branch
          %501 = sbr.rel (%p499) target = $region36
        $region35: #{tpu_custom_call.1} parent=27 // pred_region
          %p502 = scmp.lt.s32.totalorder %s35, 1
          %s503 = scalar_select %p502, %s35, 1
          %s504 = smul.addr %s503, 2
          %s505 = smul.addr %s504, 4
          %s506 = scalar_lea.vmem %s1, %s505
        $region36: #{tpu_custom_call.1} parent=27 // pred_fallthru
          _
        // Predicated region
        $region37: #{tpu_custom_call.1} parent=27 // pred_check
          %p507 = pneg %p121
        $region38: #{tpu_custom_call.1} parent=27 // pred_check_branch
          %509 = sbr.rel (%p507) target = $region40
        $region39: #{tpu_custom_call.1} parent=27 // pred_region
          %p510 = scmp.lt.s32.totalorder %s35, 1
          %s511 = scalar_select %p510, %s35, 1
          %s512 = smul.addr %s511, 2
          %s513 = smul.addr %s512, 4
          %s514 = scalar_lea.vmem %s2, %s513
        $region40: #{tpu_custom_call.1} parent=27 // pred_fallthru
          _
        // Predicated region
        $region41: #{tpu_custom_call.1} parent=27 // pred_check
          %p515 = pneg %p149
        $region42: #{tpu_custom_call.1} parent=27 // pred_check_branch
          %517 = sbr.rel (%p515) target = $region44
        $region43: #{tpu_custom_call.1} parent=27 // pred_region
          %s518 = smul.u32 2, %s36
          %p519 = scmp.lt.s32.totalorder %s35, 1
          %s520 = scalar_select %p519, %s35, 1
          %p521 = scmp.lt.s32.totalorder %s518, 1
          %s522 = scalar_select %p521, %s518, 1
          %s523 = smul.addr %s520, 2
          %s524 = sadd.s32 %s522, %s523
          %s525 = smul.addr %s524, 4
          %s526 = scalar_lea.vmem %s3, %s525
          %s527 = smul.u32 2, %s36
        $region44: #{tpu_custom_call.1} parent=27 // pred_fallthru
          _
        // Predicated region
        $region45: #{tpu_custom_call.1} parent=27 // pred_check
          %p528 = pneg %p175
        $region46: #{tpu_custom_call.1} parent=27 // pred_check_branch
          %530 = sbr.rel (%p528) target = $region48
        $region47: #{tpu_custom_call.1} parent=27 // pred_region
          %p531 = scmp.lt.s32.totalorder %s37, 1
          %s532 = scalar_select %p531, %s37, 1
          %s533 = smul.addr %s532, 8
          %s534 = smul.addr %s533, 4
          %s535 = scalar_lea.vmem %s4, %s534
        $region48: #{tpu_custom_call.1} parent=27 // pred_fallthru
          _
        // Predicated region
        $region49: #{tpu_custom_call.1} parent=27 // pred_check
          %p536 = pneg %p201
        $region50: #{tpu_custom_call.1} parent=27 // pred_check_branch
          %538 = sbr.rel (%p536) target = $region52
        $region51: #{tpu_custom_call.1} parent=27 // pred_region
          %p539 = scmp.lt.s32.totalorder %s37, 1
          %s540 = scalar_select %p539, %s37, 1
          %s541 = scalar_lea.vmem %s5, %s540
        $region52: #{tpu_custom_call.1} parent=27 // pred_fallthru
          _
        // Predicated region
        $region53: #{tpu_custom_call.1} parent=27 // pred_check
          %p542 = pneg %p227
        $region54: #{tpu_custom_call.1} parent=27 // pred_check_branch
          %544 = sbr.rel (%p542) target = $region56
        $region55: #{tpu_custom_call.1} parent=27 // pred_region
          %p545 = scmp.lt.s32.totalorder %s37, 1
          %s546 = scalar_select %p545, %s37, 1
          %s547 = smul.addr %s546, 8
          %s548 = smul.addr %s547, 4
          %s549 = scalar_lea.vmem %s6, %s548
        $region56: #{tpu_custom_call.1} parent=27 // pred_fallthru
          _
        // Predicated region
        $region57: #{tpu_custom_call.1} parent=27 // pred_check
          %p550 = pneg %p253
        $region58: #{tpu_custom_call.1} parent=27 // pred_check_branch
          %552 = sbr.rel (%p550) target = $region60
        $region59: #{tpu_custom_call.1} parent=27 // pred_region
          %p553 = scmp.lt.s32.totalorder %s37, 1
          %s554 = scalar_select %p553, %s37, 1
          %s555 = scalar_lea.vmem %s7, %s554
        $region60: #{tpu_custom_call.1} parent=27 // pred_fallthru
          _
        // Predicated region
        $region61: #{tpu_custom_call.1} parent=27 // pred_check
          %p556 = pneg %p279
        $region62: #{tpu_custom_call.1} parent=27 // pred_check_branch
          %558 = sbr.rel (%p556) target = $region64
        $region63: #{tpu_custom_call.1} parent=27 // pred_region
          %p559 = scmp.lt.s32.totalorder %s37, 1
          %s560 = scalar_select %p559, %s37, 1
          %s561 = smul.addr %s560, 8
          %s562 = smul.addr %s561, 4
          %s563 = scalar_lea.vmem %s8, %s562
        $region64: #{tpu_custom_call.1} parent=27 // pred_fallthru
          _
        // Predicated region
        $region65: #{tpu_custom_call.1} parent=27 // pred_check
          %p564 = pneg %p305
        $region66: #{tpu_custom_call.1} parent=27 // pred_check_branch
          %566 = sbr.rel (%p564) target = $region68
        $region67: #{tpu_custom_call.1} parent=27 // pred_region
          %p567 = scmp.lt.s32.totalorder %s37, 1
          %s568 = scalar_select %p567, %s37, 1
          %s569 = scalar_lea.vmem %s9, %s568
        $region68: #{tpu_custom_call.1} parent=27 // pred_fallthru
          _
        // Predicated region
        $region69: #{tpu_custom_call.1} parent=27 // pred_check
          %p570 = pneg %p331
        $region70: #{tpu_custom_call.1} parent=27 // pred_check_branch
          %572 = sbr.rel (%p570) target = $region72
        $region71: #{tpu_custom_call.1} parent=27 // pred_region
          %p573 = scmp.lt.s32.totalorder %s37, 1
          %s574 = scalar_select %p573, %s37, 1
          %s575 = smul.addr %s574, 4
          %s576 = smul.addr %s575, 4
          %s577 = scalar_lea.vmem %s10, %s576
        $region72: #{tpu_custom_call.1} parent=27 // pred_fallthru
          _
      $region28: #{tpu_custom_call.1} parent=5 // pred_fallthru
        _
      %p578 = scmp.le.s32.totalorder 1, %s28
      %p579 = scmp.lt.s32.totalorder %s28, 5
      %p580 = pnand %p578, %p579
      %p581 = pneg %p580
      // Predicated region
      $region73: #{tpu_custom_call.1} parent=5 // pred_check
        _
      $region74: #{tpu_custom_call.1} parent=5 // pred_check_branch
        %583 = sbr.rel (%p580) target = $region76
      $region75: #{tpu_custom_call.1} parent=5 // pred_region
        %s584 = ssub.s32 %s28, 1
        %s585 = smul.u32 2, %s39
        %p586 = scmp.lt.s32.totalorder %s38, 1
        %s587 = scalar_select %p586, %s38, 1
        %p588 = scmp.lt.s32.totalorder %s585, 1
        %s589 = scalar_select %p588, %s585, 1
        %s590 = smul.addr %s587, 2
        %s591 = sadd.s32 %s589, %s590
        %s592 = smul.addr %s591, 8
        %s593 = scalar_lea.vmem %s0, %s592
        %p594 = pneg %p75
        %p595 = pneg %p72
        %p596 = scmp.lt.s32.totalorder %s38, 1
        %s597 = scalar_select %p596, %s38, 1
        %s598 = smul.addr %s597, 2
        %s599 = smul.addr %s598, 4
        %s600 = scalar_lea.vmem %s1, %s599
        %p601 = pneg %p101
        %p602 = pneg %p98
        %p603 = scmp.lt.s32.totalorder %s38, 1
        %s604 = scalar_select %p603, %s38, 1
        %s605 = smul.addr %s604, 2
        %s606 = smul.addr %s605, 4
        %s607 = scalar_lea.vmem %s2, %s606
        %p608 = pneg %p127
        %p609 = pneg %p124
        %s610 = smul.u32 2, %s39
        %p611 = scmp.lt.s32.totalorder %s38, 1
        %s612 = scalar_select %p611, %s38, 1
        %p613 = scmp.lt.s32.totalorder %s610, 1
        %s614 = scalar_select %p613, %s610, 1
        %s615 = smul.addr %s612, 2
        %s616 = sadd.s32 %s614, %s615
        %s617 = smul.addr %s616, 4
        %s618 = scalar_lea.vmem %s3, %s617
        %p619 = pneg %p155
        %p620 = pneg %p152
        %p621 = scmp.lt.s32.totalorder %s40, 1
        %s622 = scalar_select %p621, %s40, 1
        %s623 = smul.addr %s622, 8
        %s624 = smul.addr %s623, 4
        %s625 = scalar_lea.vmem %s4, %s624
        %p626 = pneg %p181
        %p627 = pneg %p178
        %p628 = scmp.lt.s32.totalorder %s40, 1
        %s629 = scalar_select %p628, %s40, 1
        %s630 = scalar_lea.vmem %s5, %s629
        %p631 = pneg %p207
        %p632 = pneg %p204
        %p633 = scmp.lt.s32.totalorder %s40, 1
        %s634 = scalar_select %p633, %s40, 1
        %s635 = smul.addr %s634, 8
        %s636 = smul.addr %s635, 4
        %s637 = scalar_lea.vmem %s6, %s636
        %p638 = pneg %p233
        %p639 = pneg %p230
        %p640 = scmp.lt.s32.totalorder %s40, 1
        %s641 = scalar_select %p640, %s40, 1
        %s642 = scalar_lea.vmem %s7, %s641
        %p643 = pneg %p259
        %p644 = pneg %p256
        %p645 = scmp.lt.s32.totalorder %s40, 1
        %s646 = scalar_select %p645, %s40, 1
        %s647 = smul.addr %s646, 8
        %s648 = smul.addr %s647, 4
        %s649 = scalar_lea.vmem %s8, %s648
        %p650 = pneg %p285
        %p651 = pneg %p282
        %p652 = scmp.lt.s32.totalorder %s40, 1
        %s653 = scalar_select %p652, %s40, 1
        %s654 = scalar_lea.vmem %s9, %s653
        %p655 = pneg %p311
        %p656 = pneg %p308
        %p657 = scmp.lt.s32.totalorder %s40, 1
        %s658 = scalar_select %p657, %s40, 1
        %s659 = smul.addr %s658, 4
        %s660 = smul.addr %s659, 4
        %s661 = scalar_lea.vmem %s10, %s660
        %p662 = pneg %p337
        %p663 = pneg %p334
        %p664 = pneg %p358
        %p665 = pneg %p355
        %p666 = pneg %p379
        %p667 = pneg %p376
        %p668 = pneg %p400
        %p669 = pneg %p397
        %p670 = pneg %p428
        %p671 = pneg %p425
        %s672 = sand.u32 %s415, 1
        %s673 = scalar_lea.sflag [#allocation4], %s672
        %s674 = sand.u32 %s415, 1
        %s675 = smul.addr %s674, 16
        %s676 = scalar_lea.vmem [#allocation3], %s675
        %p677 = pneg %p458
        %p678 = pneg %p455
        %s679 = sand.u32 %s445, 1
        %s680 = scalar_lea.sflag [#allocation6], %s679
        %s681 = sand.u32 %s445, 1
        %s682 = smul.addr %s681, 8
        %s683 = scalar_lea.vmem [#allocation5], %s682
        %s684 = smul.u32 2, %s39
        %p685 = scmp.lt.s32.totalorder %s38, 1
        %s686 = scalar_select %p685, %s38, 1
        %p687 = scmp.lt.s32.totalorder %s684, 1
        %s688 = scalar_select %p687, %s684, 1
        %s689 = smul.addr %s686, 2
        %s690 = sadd.s32 %s688, %s689
        %s691 = smul.addr %s690, 8
        %s692 = scalar_lea.vmem %s0, %s691
        %s693 = smul.u32 2, %s39
        %p694 = scmp.lt.s32.totalorder %s38, 1
        %s695 = scalar_select %p694, %s38, 1
        %s696 = smul.addr %s695, 2
        %s697 = smul.addr %s696, 4
        %s698 = scalar_lea.vmem %s1, %s697
        %p699 = scmp.lt.s32.totalorder %s38, 1
        %s700 = scalar_select %p699, %s38, 1
        %s701 = smul.addr %s700, 2
        %s702 = smul.addr %s701, 4
        %s703 = scalar_lea.vmem %s2, %s702
        %s704 = smul.u32 2, %s39
        %p705 = scmp.lt.s32.totalorder %s38, 1
        %s706 = scalar_select %p705, %s38, 1
        %p707 = scmp.lt.s32.totalorder %s704, 1
        %s708 = scalar_select %p707, %s704, 1
        %s709 = smul.addr %s706, 2
        %s710 = sadd.s32 %s708, %s709
        %s711 = smul.addr %s710, 4
        %s712 = scalar_lea.vmem %s3, %s711
        %s713 = smul.u32 2, %s39
        %p714 = scmp.lt.s32.totalorder %s40, 1
        %s715 = scalar_select %p714, %s40, 1
        %s716 = smul.addr %s715, 8
        %s717 = smul.addr %s716, 4
        %s718 = scalar_lea.vmem %s4, %s717
        %p719 = scmp.lt.s32.totalorder %s40, 1
        %s720 = scalar_select %p719, %s40, 1
        %s721 = scalar_lea.vmem %s5, %s720
        %p722 = scmp.lt.s32.totalorder %s40, 1
        %s723 = scalar_select %p722, %s40, 1
        %s724 = smul.addr %s723, 8
        %s725 = smul.addr %s724, 4
        %s726 = scalar_lea.vmem %s6, %s725
        %p727 = scmp.lt.s32.totalorder %s40, 1
        %s728 = scalar_select %p727, %s40, 1
        %s729 = scalar_lea.vmem %s7, %s728
        %p730 = scmp.lt.s32.totalorder %s40, 1
        %s731 = scalar_select %p730, %s40, 1
        %s732 = smul.addr %s731, 8
        %s733 = smul.addr %s732, 4
        %s734 = scalar_lea.vmem %s8, %s733
        %p735 = scmp.lt.s32.totalorder %s40, 1
        %s736 = scalar_select %p735, %s40, 1
        %s737 = scalar_lea.vmem %s9, %s736
        %p738 = scmp.lt.s32.totalorder %s40, 1
        %s739 = scalar_select %p738, %s40, 1
        %s740 = smul.addr %s739, 4
        %s741 = smul.addr %s740, 4
        %s742 = scalar_lea.vmem %s10, %s741
        %s743 = smul.u32 2, %s39
        %s744 = smul.u32 2, %s39
        %v746 = vld [vmem:[%s692] sm:$0xff]
        %v747 = vld [vmem:[%s692 + $0x8] sm:$0xff]
        %v748 = vpack.c.bf16 %v747, %v746
        %v749 = vld [vmem:[%s698] sm:$0xf]
        %v750 = vld [vmem:[%s698 + $0x4] sm:$0xf]
        %v751 = vld [vmem:[%s703] sm:$0xf]
        %v752 = vld [vmem:[%s703 + $0x4] sm:$0xf]
        %v753 = vld [vmem:[%s712] sm:$0xf]
        %v754 = vld [vmem:[%s712 + $0x4] sm:$0xf]
        %v755 = vunpack.c.l.bf16 %v753
        %v756 = vunpack.c.l.bf16 %v754
        %v757 = vld [vmem:[%s718] sm:$0xf]
        %v758 = vld [vmem:[%s718 + $0x4] sm:$0xf]
        %v759 = vld [vmem:[%s718 + $0x8] sm:$0xf]
        %v760 = vld [vmem:[%s718 + $0xc] sm:$0xf]
        %v761 = vld [vmem:[%s718 + $0x10] sm:$0xf]
        %v762 = vld [vmem:[%s718 + $0x14] sm:$0xf]
        %v763 = vld [vmem:[%s718 + $0x18] sm:$0xf]
        %v764 = vld [vmem:[%s718 + $0x1c] sm:$0xf]
        %v765 = vld [vmem:[%s721] sm:$0x1]
        %v767 = vlaneseq
        %v768 = vshrl.u32 %v767, 7
        %v769 = vsub.s32 0, %v768
        %v770 = vrot.slane %v765, %v769
        %v780 = vunpack.c.l.b16 %v757
        %v781 = vunpack.c.l.b16 %v758
        %v782 = vunpack.c.l.b16 %v759
        %v783 = vunpack.c.l.b16 %v760
        %v784 = vunpack.c.l.b16 %v761
        %v785 = vunpack.c.l.b16 %v762
        %v786 = vunpack.c.l.b16 %v763
        %v787 = vunpack.c.l.b16 %v764
        %v788 = vpack.c.b16 %v781, %v780
        %v789 = vpack.c.b16 %v783, %v782
        %v790 = vpack.c.b16 %v785, %v784
        %v791 = vpack.c.b16 %v787, %v786
        %vm796 = vcmask 523264
        %v798 = vsel %vm796, %v748, 0
        %800 = vmatprep.subr.bf16.mxu0 0
        %801 = vmatpush1.bf16.msra.mxu0 0
        %802 = vmatprep.subr.bf16.mxu0 0
        %803 = vmatpush1.bf16.msra.mxu0 0
        %804 = vmatprep.subr.bf16.mxu0 0
        %805 = vmatpush1.bf16.msra.mxu0 0
        %806 = vmatprep.subr.bf16.mxu0 0
        %807 = vmatpush1.bf16.msra.mxu0 0
        %808 = vmatprep.subr.bf16.mxu0 0
        %809 = vmatpush1.bf16.msra.mxu0 %v791
        %810 = vmatprep.subr.bf16.mxu0 0
        %811 = vmatpush1.bf16.msra.mxu0 %v790
        %812 = vmatprep.subr.bf16.mxu0 0
        %813 = vmatpush1.bf16.msra.mxu0 %v789
        %814 = vmatprep.subr.bf16.mxu0 0
        %815 = vmatpush1.bf16.msra.mxu0 %v788
        %816 = vmatprep.subr.bf16.mxu0 0
        %817 = vmatpush2.bf16.msra.mxu0 0
        %818 = vmatprep.subr.bf16.mxu0 0
        %819 = vmatpush2.bf16.msra.mxu0 0
        %820 = vmatprep.subr.bf16.mxu0 0
        %821 = vmatpush2.bf16.msra.mxu0 0
        %822 = vmatprep.subr.bf16.mxu0 0
        %823 = vmatpush2.bf16.msra.mxu0 0
        %824 = vmatprep.subr.bf16.mxu0 0
        %825 = vmatpush2.bf16.msra.mxu0 0
        %826 = vmatprep.subr.bf16.mxu0 0
        %827 = vmatpush2.bf16.msra.mxu0 0
        %828 = vmatprep.subr.bf16.mxu0 0
        %829 = vmatpush2.bf16.msra.mxu0 0
        %830 = vmatprep.subr.bf16.mxu0 0
        %831 = vmatpush2.bf16.msra.mxu0 0
        %832 = vmatprep.mubr.bf16.mxu0 0
        %833 = vmatmul.mubr.bf16.gmra.mxu0 %v798
        %v834 = vpop.f32.mrf.mxu0
        %v835 = vadd.f32 %v770, %v834
        %v836 = vpop.f32.mrf.mxu0
        %v837 = vpop.f32.mrf.mxu0
        %v838 = vadd.f32 %v770, %v837
        %v839 = vpop.f32.mrf.mxu0
        %840 = vdwg.mxu0
        %v841 = vmul.f32 %v835, 0.17677669
        %v842 = vmul.f32 %v838, 0.17677669
        %v843 = vld [vmem:[%s726] sm:$0xf]
        %v844 = vld [vmem:[%s726 + $0x4] sm:$0xf]
        %v845 = vld [vmem:[%s726 + $0x8] sm:$0xf]
        %v846 = vld [vmem:[%s726 + $0xc] sm:$0xf]
        %v847 = vld [vmem:[%s726 + $0x10] sm:$0xf]
        %v848 = vld [vmem:[%s726 + $0x14] sm:$0xf]
        %v849 = vld [vmem:[%s726 + $0x18] sm:$0xf]
        %v850 = vld [vmem:[%s726 + $0x1c] sm:$0xf]
        %v851 = vld [vmem:[%s729] sm:$0x1]
        %v853 = vlaneseq
        %v854 = vshrl.u32 %v853, 7
        %v855 = vsub.s32 0, %v854
        %v856 = vrot.slane %v851, %v855
        %v860 = vunpack.c.l.b16 %v749
        %v861 = vunpack.c.l.b16 %v750
        %v862 = vpack.c.b16 %v861, %v860
        %v871 = vunpack.c.l.b16 %v843
        %v872 = vunpack.c.l.b16 %v844
        %v873 = vunpack.c.l.b16 %v845
        %v874 = vunpack.c.l.b16 %v846
        %v875 = vunpack.c.l.b16 %v847
        %v876 = vunpack.c.l.b16 %v848
        %v877 = vunpack.c.l.b16 %v849
        %v878 = vunpack.c.l.b16 %v850
        %v879 = vpack.c.b16 %v872, %v871
        %v880 = vpack.c.b16 %v874, %v873
        %v881 = vpack.c.b16 %v876, %v875
        %v882 = vpack.c.b16 %v878, %v877
        %v888 = vsel %vm796, %v862, 0
        %890 = vmatprep.subr.bf16.mxu0 0
        %891 = vmatpush1.bf16.msra.mxu0 0
        %892 = vmatprep.subr.bf16.mxu0 0
        %893 = vmatpush1.bf16.msra.mxu0 0
        %894 = vmatprep.subr.bf16.mxu0 0
        %895 = vmatpush1.bf16.msra.mxu0 0
        %896 = vmatprep.subr.bf16.mxu0 0
        %897 = vmatpush1.bf16.msra.mxu0 0
        %898 = vmatprep.subr.bf16.mxu0 0
        %899 = vmatpush1.bf16.msra.mxu0 %v882
        %900 = vmatprep.subr.bf16.mxu0 0
        %901 = vmatpush1.bf16.msra.mxu0 %v881
        %902 = vmatprep.subr.bf16.mxu0 0
        %903 = vmatpush1.bf16.msra.mxu0 %v880
        %904 = vmatprep.subr.bf16.mxu0 0
        %905 = vmatpush1.bf16.msra.mxu0 %v879
        %906 = vmatprep.subr.bf16.mxu0 0
        %907 = vmatpush2.bf16.msra.mxu0 0
        %908 = vmatprep.subr.bf16.mxu0 0
        %909 = vmatpush2.bf16.msra.mxu0 0
        %910 = vmatprep.subr.bf16.mxu0 0
        %911 = vmatpush2.bf16.msra.mxu0 0
        %912 = vmatprep.subr.bf16.mxu0 0
        %913 = vmatpush2.bf16.msra.mxu0 0
        %914 = vmatprep.subr.bf16.mxu0 0
        %915 = vmatpush2.bf16.msra.mxu0 0
        %916 = vmatprep.subr.bf16.mxu0 0
        %917 = vmatpush2.bf16.msra.mxu0 0
        %918 = vmatprep.subr.bf16.mxu0 0
        %919 = vmatpush2.bf16.msra.mxu0 0
        %920 = vmatprep.subr.bf16.mxu0 0
        %921 = vmatpush2.bf16.msra.mxu0 0
        %922 = vmatprep.mubr.bf16.mxu0 0
        %923 = vmatmul.mubr.bf16.gmra.mxu0 %v888
        %v924 = vpop.f32.mrf.mxu0
        %v925 = vadd.f32 %v856, %v924
        %v926 = vpop.f32.mrf.mxu0
        %v927 = vpop.f32.mrf.mxu0
        %v928 = vadd.f32 %v856, %v927
        %v929 = vpop.f32.mrf.mxu0
        %930 = vdwg.mxu0
        %v931 = vld [vmem:[%s734] sm:$0xf]
        %v932 = vld [vmem:[%s734 + $0x4] sm:$0xf]
        %v933 = vld [vmem:[%s734 + $0x8] sm:$0xf]
        %v934 = vld [vmem:[%s734 + $0xc] sm:$0xf]
        %v935 = vld [vmem:[%s734 + $0x10] sm:$0xf]
        %v936 = vld [vmem:[%s734 + $0x14] sm:$0xf]
        %v937 = vld [vmem:[%s734 + $0x18] sm:$0xf]
        %v938 = vld [vmem:[%s734 + $0x1c] sm:$0xf]
        %v939 = vld [vmem:[%s737] sm:$0x1]
        %v941 = vlaneseq
        %v942 = vshrl.u32 %v941, 7
        %v943 = vsub.s32 0, %v942
        %v944 = vrot.slane %v939, %v943
        %v948 = vunpack.c.l.b16 %v751
        %v949 = vunpack.c.l.b16 %v752
        %v950 = vpack.c.b16 %v949, %v948
        %v959 = vunpack.c.l.b16 %v931
        %v960 = vunpack.c.l.b16 %v932
        %v961 = vunpack.c.l.b16 %v933
        %v962 = vunpack.c.l.b16 %v934
        %v963 = vunpack.c.l.b16 %v935
        %v964 = vunpack.c.l.b16 %v936
        %v965 = vunpack.c.l.b16 %v937
        %v966 = vunpack.c.l.b16 %v938
        %v967 = vpack.c.b16 %v960, %v959
        %v968 = vpack.c.b16 %v962, %v961
        %v969 = vpack.c.b16 %v964, %v963
        %v970 = vpack.c.b16 %v966, %v965
        %v976 = vsel %vm796, %v950, 0
        %978 = vmatprep.subr.bf16.mxu0 0
        %979 = vmatpush1.bf16.msra.mxu0 0
        %980 = vmatprep.subr.bf16.mxu0 0
        %981 = vmatpush1.bf16.msra.mxu0 0
        %982 = vmatprep.subr.bf16.mxu0 0
        %983 = vmatpush1.bf16.msra.mxu0 0
        %984 = vmatprep.subr.bf16.mxu0 0
        %985 = vmatpush1.bf16.msra.mxu0 0
        %986 = vmatprep.subr.bf16.mxu0 0
        %987 = vmatpush1.bf16.msra.mxu0 %v970
        %988 = vmatprep.subr.bf16.mxu0 0
        %989 = vmatpush1.bf16.msra.mxu0 %v969
        %990 = vmatprep.subr.bf16.mxu0 0
        %991 = vmatpush1.bf16.msra.mxu0 %v968
        %992 = vmatprep.subr.bf16.mxu0 0
        %993 = vmatpush1.bf16.msra.mxu0 %v967
        %994 = vmatprep.subr.bf16.mxu0 0
        %995 = vmatpush2.bf16.msra.mxu0 0
        %996 = vmatprep.subr.bf16.mxu0 0
        %997 = vmatpush2.bf16.msra.mxu0 0
        %998 = vmatprep.subr.bf16.mxu0 0
        %999 = vmatpush2.bf16.msra.mxu0 0
        %1000 = vmatprep.subr.bf16.mxu0 0
        %1001 = vmatpush2.bf16.msra.mxu0 0
        %1002 = vmatprep.subr.bf16.mxu0 0
        %1003 = vmatpush2.bf16.msra.mxu0 0
        %1004 = vmatprep.subr.bf16.mxu0 0
        %1005 = vmatpush2.bf16.msra.mxu0 0
        %1006 = vmatprep.subr.bf16.mxu0 0
        %1007 = vmatpush2.bf16.msra.mxu0 0
        %1008 = vmatprep.subr.bf16.mxu0 0
        %1009 = vmatpush2.bf16.msra.mxu0 0
        %1010 = vmatprep.mubr.bf16.mxu0 0
        %1011 = vmatmul.mubr.bf16.gmra.mxu0 %v976
        %v1012 = vpop.f32.mrf.mxu0
        %v1013 = vadd.f32 %v944, %v1012
        %v1014 = vpop.f32.mrf.mxu0
        %v1015 = vpop.f32.mrf.mxu0
        %v1016 = vadd.f32 %v944, %v1015
        %v1017 = vpop.f32.mrf.mxu0
        %1018 = vdwg.mxu0
        %v1019 = vpack.c.bf16 %v842, %v841
        %v1020 = vpack.c.bf16 %v928, %v925
        %vm1021 = vcmask 261120
        %v1023 = vsel %vm1021, %v1019, 0
        %v1026 = vsel %vm1021, %v1020, 0
        %1028 = vmatprep.subr.bf16.mxu0 0
        %1029 = vmatpush1.bf16.xpose.msra.mxu0 0
        %1030 = vmatprep.subr.bf16.mxu0 0
        %1031 = vmatpush1.bf16.xpose.msra.mxu0 0
        %1032 = vmatprep.subr.bf16.mxu0 0
        %1033 = vmatpush1.bf16.xpose.msra.mxu0 0
        %1034 = vmatprep.subr.bf16.mxu0 0
        %1035 = vmatpush1.bf16.xpose.msra.mxu0 0
        %1036 = vmatprep.subr.bf16.mxu0 0
        %1037 = vmatpush1.bf16.xpose.msra.mxu0 0
        %1038 = vmatprep.subr.bf16.mxu0 0
        %1039 = vmatpush1.bf16.xpose.msra.mxu0 0
        %1040 = vmatprep.subr.bf16.mxu0 0
        %1041 = vmatpush1.bf16.xpose.msra.mxu0 0
        %1042 = vmatprep.subr.bf16.mxu0 0
        %1043 = vmatpush1.bf16.xpose.msra.mxu0 %v1026
        %1044 = vmatprep.subr.bf16.mxu0 0
        %1045 = vmatpush2.bf16.xpose.msra.mxu0 0
        %1046 = vmatprep.subr.bf16.mxu0 0
        %1047 = vmatpush2.bf16.xpose.msra.mxu0 0
        %1048 = vmatprep.subr.bf16.mxu0 0
        %1049 = vmatpush2.bf16.xpose.msra.mxu0 0
        %1050 = vmatprep.subr.bf16.mxu0 0
        %1051 = vmatpush2.bf16.xpose.msra.mxu0 0
        %1052 = vmatprep.subr.bf16.mxu0 0
        %1053 = vmatpush2.bf16.xpose.msra.mxu0 0
        %1054 = vmatprep.subr.bf16.mxu0 0
        %1055 = vmatpush2.bf16.xpose.msra.mxu0 0
        %1056 = vmatprep.subr.bf16.mxu0 0
        %1057 = vmatpush2.bf16.xpose.msra.mxu0 0
        %1058 = vmatprep.subr.bf16.mxu0 0
        %1059 = vmatpush2.bf16.xpose.msra.mxu0 0
        %1060 = vmatprep.mubr.bf16.mxu0 0
        %1061 = vmatmul.mubr.bf16.gmra.mxu0 %v1023
        %v1062 = vpop.f32.mrf.mxu0
        %v1063 = vadd.f32 %v755, %v1062
        %v1064 = vpop.f32.mrf.mxu0
        %v1065 = vpop.f32.mrf.mxu0
        %v1066 = vadd.f32 %v756, %v1065
        %v1067 = vpop.f32.mrf.mxu0
        %1068 = vdwg.mxu0
        %vm1069 = vcmask 130048
        %v1070 = vsel %vm1069, %v1063, -inf
        %1071 = vmax.xlane.f32.xlu0 %v1070
        %v1072 = vpop.xlane.xlu0 %1071
        %v1073 = vsel %vm1069, %v1066, -inf
        %1074 = vmax.xlane.f32.xlu0 %v1073
        %v1075 = vpop.xlane.xlu0 %1074
        %v1076 = vsub.f32 %v1063, %v1072
        %v1077 = vsub.f32 %v1066, %v1075
        %v1078 = vmul.f32 %v1076, 1.442695
        %v1079 = vpow.pop %v1078
        %v1080 = vmul.f32 %v1077, 1.442695
        %v1081 = vpow.pop %v1080
        %v1082 = vsel %vm1069, %v1079, 0.0
        %1083 = vadd.xlane.f32.xlu0 %v1082
        %v1084 = vpop.xlane.xlu0 %1083
        %v1085 = vsel %vm1069, %v1081, 0.0
        %1086 = vadd.xlane.f32.xlu0 %v1085
        %v1087 = vpop.xlane.xlu0 %1086
        %v1088 = vrcp.pop %v1084
        %v1089 = vrcp.pop %v1087
        %v1090 = vmul.f32 %v1079, %v1088
        %v1091 = vmul.f32 %v1081, %v1089
        %v1092 = vpack.c.bf16 %v1091, %v1090
        %v1094 = vunpack.c.l.b16 %v1092
        %v1095 = vunpack.c.h.b16 %v1092
        %v1096 = vpack.c.b16 %v1094, %v1094
        %v1097 = vpack.c.b16 %v1095, %v1095
        %vm1100 = vcmask 125952
        %1101 = vst.msk [vmem:[%s683] sm:$0xf] %vm1100, %v1096
        %1102 = vst.msk [vmem:[%s683 + $0x4] sm:$0xf] %vm1100, %v1097
        %v1103 = vpack.c.bf16 %v1016, %v1013
        %v1105 = vsel %vm1069, %v1092, 0
        %1107 = vmatprep.subr.bf16.mxu0 0
        %1108 = vmatpush1.bf16.msra.mxu0 0
        %1109 = vmatprep.subr.bf16.mxu0 0
        %1110 = vmatpush1.bf16.msra.mxu0 0
        %1111 = vmatprep.subr.bf16.mxu0 0
        %1112 = vmatpush1.bf16.msra.mxu0 0
        %1113 = vmatprep.subr.bf16.mxu0 0
        %1114 = vmatpush1.bf16.msra.mxu0 0
        %1115 = vmatprep.subr.bf16.mxu0 0
        %1116 = vmatpush1.bf16.msra.mxu0 0
        %1117 = vmatprep.subr.bf16.mxu0 0
        %1118 = vmatpush1.bf16.msra.mxu0 0
        %1119 = vmatprep.subr.bf16.mxu0 0
        %1120 = vmatpush1.bf16.msra.mxu0 0
        %1121 = vmatprep.subr.bf16.mxu0 0
        %1122 = vmatpush1.bf16.msra.mxu0 %v1103
        %1123 = vmatprep.subr.bf16.mxu0 0
        %1124 = vmatpush2.bf16.msra.mxu0 0
        %1125 = vmatprep.subr.bf16.mxu0 0
        %1126 = vmatpush2.bf16.msra.mxu0 0
        %1127 = vmatprep.subr.bf16.mxu0 0
        %1128 = vmatpush2.bf16.msra.mxu0 0
        %1129 = vmatprep.subr.bf16.mxu0 0
        %1130 = vmatpush2.bf16.msra.mxu0 0
        %1131 = vmatprep.subr.bf16.mxu0 0
        %1132 = vmatpush2.bf16.msra.mxu0 0
        %1133 = vmatprep.subr.bf16.mxu0 0
        %1134 = vmatpush2.bf16.msra.mxu0 0
        %1135 = vmatprep.subr.bf16.mxu0 0
        %1136 = vmatpush2.bf16.msra.mxu0 0
        %1137 = vmatprep.subr.bf16.mxu0 0
        %1138 = vmatpush2.bf16.msra.mxu0 0
        %1139 = vmatprep.mubr.bf16.mxu0 0
        %1140 = vmatmul.mubr.bf16.gmra.mxu0 %v1105
        %v1141 = vpop.f32.mrf.mxu0
        %v1142 = vadd.f32 0.0, %v1141
        %v1143 = vpop.f32.mrf.mxu0
        %v1144 = vpop.f32.mrf.mxu0
        %v1145 = vadd.f32 0.0, %v1144
        %v1146 = vpop.f32.mrf.mxu0
        %1147 = vdwg.mxu0
        %p1148 = scmp.eq.s32.totalorder %s40, 0
        // Predicated region
        $region77: #{tpu_custom_call.1} parent=75 // pred_check
          %p1149 = pneg %p1148
        $region78: #{tpu_custom_call.1} parent=75 // pred_check_branch
          %1151 = sbr.rel (%p1149) target = $region80
        $region79: #{tpu_custom_call.1} parent=75 // pred_region
          %1152 = vst.msk [vmem:[#allocation2] sm:$0xff] %vm796, 0.0
          %1153 = vst.msk [vmem:[#allocation2 + $0x8] sm:$0xff] %vm796, 0.0
        $region80: #{tpu_custom_call.1} parent=75 // pred_fallthru
          _
        %v1154 = vld [vmem:[#allocation2] sm:$0xff]
        %v1155 = vld [vmem:[#allocation2 + $0x8] sm:$0xff]
        %v1156 = vpack.c.bf16 %v1145, %v1142
        %v1157 = vld [vmem:[%s742] sm:$0xf]
        %v1158 = vld [vmem:[%s742 + $0x4] sm:$0xf]
        %v1159 = vld [vmem:[%s742 + $0x8] sm:$0xf]
        %v1160 = vld [vmem:[%s742 + $0xc] sm:$0xf]
        %v1165 = vunpack.c.l.b16 %v1157
        %v1166 = vunpack.c.l.b16 %v1158
        %v1167 = vunpack.c.l.b16 %v1159
        %v1168 = vunpack.c.l.b16 %v1160
        %v1169 = vpack.c.b16 %v1166, %v1165
        %v1170 = vpack.c.b16 %v1168, %v1167
        %v1174 = vsel %vm1021, %v1156, 0
        %1176 = vmatprep.subr.bf16.mxu0 0
        %1177 = vmatpush1.bf16.msra.mxu0 0
        %1178 = vmatprep.subr.bf16.mxu0 0
        %1179 = vmatpush1.bf16.msra.mxu0 0
        %1180 = vmatprep.subr.bf16.mxu0 0
        %1181 = vmatpush1.bf16.msra.mxu0 0
        %1182 = vmatprep.subr.bf16.mxu0 0
        %1183 = vmatpush1.bf16.msra.mxu0 0
        %1184 = vmatprep.subr.bf16.mxu0 0
        %1185 = vmatpush1.bf16.msra.mxu0 0
        %1186 = vmatprep.subr.bf16.mxu0 0
        %1187 = vmatpush1.bf16.msra.mxu0 0
        %1188 = vmatprep.subr.bf16.mxu0 0
        %1189 = vmatpush1.bf16.msra.mxu0 %v1170
        %1190 = vmatprep.subr.bf16.mxu0 0
        %1191 = vmatpush1.bf16.msra.mxu0 %v1169
        %1192 = vmatprep.subr.bf16.mxu0 0
        %1193 = vmatpush2.bf16.msra.mxu0 0
        %1194 = vmatprep.subr.bf16.mxu0 0
        %1195 = vmatpush2.bf16.msra.mxu0 0
        %1196 = vmatprep.subr.bf16.mxu0 0
        %1197 = vmatpush2.bf16.msra.mxu0 0
        %1198 = vmatprep.subr.bf16.mxu0 0
        %1199 = vmatpush2.bf16.msra.mxu0 0
        %1200 = vmatprep.subr.bf16.mxu0 0
        %1201 = vmatpush2.bf16.msra.mxu0 0
        %1202 = vmatprep.subr.bf16.mxu0 0
        %1203 = vmatpush2.bf16.msra.mxu0 0
        %1204 = vmatprep.subr.bf16.mxu0 0
        %1205 = vmatpush2.bf16.msra.mxu0 0
        %1206 = vmatprep.subr.bf16.mxu0 0
        %1207 = vmatpush2.bf16.msra.mxu0 0
        %1208 = vmatprep.mubr.bf16.mxu0 0
        %1209 = vmatmul.mubr.bf16.gmra.mxu0 %v1174
        %v1210 = vpop.f32.mrf.mxu0
        %v1211 = vadd.f32 0.0, %v1210
        %v1212 = vpop.f32.mrf.mxu0
        %v1213 = vpop.f32.mrf.mxu0
        %v1214 = vadd.f32 0.0, %v1213
        %v1215 = vpop.f32.mrf.mxu0
        %1216 = vdwg.mxu0
        %v1217 = vadd.f32 %v1154, %v1211
        %v1218 = vadd.f32 %v1155, %v1214
        %1219 = vst.msk [vmem:[#allocation2] sm:$0xff] %vm796, %v1217
        %1220 = vst.msk [vmem:[#allocation2 + $0x8] sm:$0xff] %vm796, %v1218
        %p1221 = scmp.eq.s32.totalorder %s40, 1
        // Predicated region
        $region81: #{tpu_custom_call.1} parent=75 // pred_check
          %p1222 = pneg %p1221
        $region82: #{tpu_custom_call.1} parent=75 // pred_check_branch
          %1224 = sbr.rel (%p1222) target = $region84
        $region83: #{tpu_custom_call.1} parent=75 // pred_region
          %v1225 = vld [vmem:[#allocation2] sm:$0xff]
          %v1226 = vld [vmem:[#allocation2 + $0x8] sm:$0xff]
          %v1227 = vld [vmem:[%s11] sm:$0x1]
          %v1229 = vlaneseq
          %v1230 = vshrl.u32 %v1229, 7
          %v1231 = vsub.s32 0, %v1230
          %v1232 = vrot.slane %v1227, %v1231
          %v1234 = vadd.f32 %v1225, %v1232
          %v1235 = vadd.f32 %v1226, %v1232
          %v1236 = vadd.f32 %v1234, %v746
          %v1237 = vadd.f32 %v1235, %v747
          %v1238 = vsel %vm796, %v1236, 0.0
          %1239 = vadd.xlane.f32.xlu0 %v1238
          %v1240 = vpop.xlane.xlu0 %1239
          %v1241 = vsel %vm796, %v1237, 0.0
          %1242 = vadd.xlane.f32.xlu0 %v1241
          %v1243 = vpop.xlane.xlu0 %1242
          %v1244 = vrcp.pop 64.0
          %v1245 = vmul.f32 %v1240, %v1244
          %v1246 = vmul.f32 %v1243, %v1244
          %v1247 = vmul.f32 %v1236, %v1236
          %v1248 = vmul.f32 %v1237, %v1237
          %v1249 = vsel %vm796, %v1247, 0.0
          %1250 = vadd.xlane.f32.xlu0 %v1249
          %v1251 = vpop.xlane.xlu0 %1250
          %v1252 = vsel %vm796, %v1248, 0.0
          %1253 = vadd.xlane.f32.xlu0 %v1252
          %v1254 = vpop.xlane.xlu0 %1253
          %v1255 = vmul.f32 %v1251, %v1244
          %v1256 = vmul.f32 %v1254, %v1244
          %v1257 = vmul.f32 %v1245, %v1245
          %v1258 = vmul.f32 %v1246, %v1246
          %v1259 = vsub.f32 %v1255, %v1257
          %v1260 = vsub.f32 %v1256, %v1258
          %v1261 = vsub.f32 %v1236, %v1245
          %v1262 = vsub.f32 %v1237, %v1246
          %v1263 = vadd.f32 %v1259, 1e-05
          %v1264 = vadd.f32 %v1260, 1e-05
          %v1265 = vrsqrt.pop %v1263
          %v1266 = vrsqrt.pop %v1264
          %v1267 = vmul.f32 %v1261, %v1265
          %v1268 = vmul.f32 %v1262, %v1266
          %v1269 = vld [vmem:[%s12] sm:$0x1]
          %v1271 = vlaneseq
          %v1272 = vshrl.u32 %v1271, 7
          %v1273 = vsub.s32 0, %v1272
          %v1274 = vrot.slane %v1269, %v1273
          %v1276 = vmul.f32 %v1267, %v1274
          %v1277 = vmul.f32 %v1268, %v1274
          %v1278 = vld [vmem:[%s13] sm:$0x1]
          %v1280 = vlaneseq
          %v1281 = vshrl.u32 %v1280, 7
          %v1282 = vsub.s32 0, %v1281
          %v1283 = vrot.slane %v1278, %v1282
          %v1285 = vadd.f32 %v1276, %v1283
          %v1286 = vadd.f32 %v1277, %v1283
          %1287 = vst.msk [vmem:[%s676] sm:$0xff] %vm796, %v1285
          %1288 = vst.msk [vmem:[%s676 + $0x8] sm:$0xff] %vm796, %v1286
        $region84: #{tpu_custom_call.1} parent=75 // pred_fallthru
          _
        %s1289 = sand.u32 %s415, 1
        %s1290 = scalar_lea.sflag [#allocation4], %s1289
        %s1291 = sand.u32 %s415, 1
        %s1292 = smul.addr %s1291, 16
        %s1293 = scalar_lea.vmem [#allocation3], %s1292
        %s1294 = sand.u32 %s445, 1
        %s1295 = scalar_lea.sflag [#allocation6], %s1294
        %s1296 = sand.u32 %s445, 1
        %s1297 = smul.addr %s1296, 8
        %s1298 = scalar_lea.vmem [#allocation5], %s1297
        // Predicated region
        $region85: #{tpu_custom_call.1} parent=75 // pred_check
          %p1299 = pneg %p425
        $region86: #{tpu_custom_call.1} parent=75 // pred_check_branch
          %1301 = sbr.rel (%p1299) target = $region88
        $region87: #{tpu_custom_call.1} parent=75 // pred_region
          %s1302 = smul.u32 2, %s39
          %s1304 = ssub.s32 256, 256
          %1305 = vsyncadd %s1290, %s1304
          %s1306 = smul.addr %s38, 2
          %s1307 = sadd.s32 %s1302, %s1306
          %s1308 = smul.addr %s1307, 128
          %s1309 = scalar_lea.hbm %s14, %s1308
          %s1310 = sshll.u32 %s1293, 4
          %s1311 = int_to_ptr.vmem [resolvable:$true] %s1310
          %1316 = dma.vmem_to_hbm [thread:$0]  %s1311, 256, %s1309, %s1290, 128, 128, 8
        $region88: #{tpu_custom_call.1} parent=75 // pred_fallthru
          _
        // Predicated region
        $region89: #{tpu_custom_call.1} parent=75 // pred_check
          %p1317 = pneg %p455
        $region90: #{tpu_custom_call.1} parent=75 // pred_check_branch
          %1319 = sbr.rel (%p1317) target = $region92
        $region91: #{tpu_custom_call.1} parent=75 // pred_region
          %s1320 = smul.u32 2, %s39
          %s1322 = ssub.s32 128, 128
          %1323 = vsyncadd %s1295, %s1322
          %s1324 = smul.addr %s38, 2
          %s1325 = sadd.s32 %s1320, %s1324
          %s1326 = smul.addr %s40, 4
          %s1327 = sadd.s32 %s1325, %s1326
          %s1328 = smul.addr %s1327, 64
          %s1329 = scalar_lea.hbm %s15, %s1328
          %s1330 = sshll.u32 %s1298, 4
          %s1331 = int_to_ptr.vmem [resolvable:$true] %s1330
          %1336 = dma.vmem_to_hbm [thread:$0]  %s1331, 128, %s1329, %s1295, 64, 64, 4
        $region92: #{tpu_custom_call.1} parent=75 // pred_fallthru
          _
      $region76: #{tpu_custom_call.1} parent=5 // pred_fallthru
        _
      %p1337 = scmp.le.s32.totalorder 2, %s28
      // Predicated region
      $region93: #{tpu_custom_call.1} parent=5 // pred_check
        %p1338 = pneg %p1337
      $region94: #{tpu_custom_call.1} parent=5 // pred_check_branch
        %1340 = sbr.rel (%p1338) target = $region96
      $region95: #{tpu_custom_call.1} parent=5 // pred_region
        %s1341 = ssub.s32 %s28, 2
        // Predicated region
        $region97: #{tpu_custom_call.1} parent=95 // pred_check
          %p1342 = pneg %p431
        $region98: #{tpu_custom_call.1} parent=95 // pred_check_branch
          %1344 = sbr.rel (%p1342) target = $region100
        $region99: #{tpu_custom_call.1} parent=95 // pred_region
          %s1345 = sand.u32 %s416, 1
          %s1346 = scalar_lea.sflag [#allocation4], %s1345
          %s1347 = sand.u32 %s416, 1
          %s1348 = smul.addr %s1347, 16
          %s1349 = scalar_lea.vmem [#allocation3], %s1348
          %1350 = dma.done %s1346, 256
        $region100: #{tpu_custom_call.1} parent=95 // pred_fallthru
          _
        // Predicated region
        $region101: #{tpu_custom_call.1} parent=95 // pred_check
          %p1351 = pneg %p461
        $region102: #{tpu_custom_call.1} parent=95 // pred_check_branch
          %1353 = sbr.rel (%p1351) target = $region104
        $region103: #{tpu_custom_call.1} parent=95 // pred_region
          %s1354 = sand.u32 %s446, 1
          %s1355 = scalar_lea.sflag [#allocation6], %s1354
          %s1356 = sand.u32 %s446, 1
          %s1357 = smul.addr %s1356, 8
          %s1358 = scalar_lea.vmem [#allocation5], %s1357
          %1359 = dma.done %s1355, 128
        $region104: #{tpu_custom_call.1} parent=95 // pred_fallthru
          _
      $region96: #{tpu_custom_call.1} parent=5 // pred_fallthru
        _
    $region6: #{tpu_custom_call.1} parent=1 // loop_footer
      %s32 = sadd.s32 1, %s28
    $region7: #{tpu_custom_call.1} parent=1 // loop_footer_branch
      %27 = sbr.rel target = $region3
    $region8: #{tpu_custom_call.1} parent=1 // loop_exit
      _
    %1360 = vsyncpa [#allocation4], 1
    %s1361 = scalar_lea.sflag [#allocation4], 1
    %1362 = vsyncpa %s1361, 1
    %1363 = vsyncpa [#allocation6], 1
    %s1364 = scalar_lea.sflag [#allocation6], 1
    %1365 = vsyncpa %s1364, 1

</llo_original>
